<compile_context>
chip_gen: v5e
topology: v5e:2x2
jax: 0.10.0
libtpu: 0.0.40
codegen_flags: <defaults>
</compile_context>

<pallas_src>
import jax
import jax.numpy as jnp
from jax import lax
from jax.experimental import pallas as pl
from jax.experimental.pallas import tpu as pltpu


def _round_up(x, m):
    return -(-x // m) * m


def _vmem_capacity_bytes():
    cap = 64 << 20  # conservative per-TensorCore default (v7x)
    try:
        info = pltpu.get_tpu_info()
        cap = int(getattr(info, "vmem_capacity_bytes", cap) or cap)
    except Exception:
        pass
    return int(min(cap, 128 << 20))


def basic_conv(x, weight, gamma, beta, *, stride=1, padding=0, dilation=1,
               eps=1e-5, relu=True, bn=True):
    """Conv2d(bias=False) -> BatchNorm2d (train-mode batch stats) -> ReLU."""
    out_planes, in_planes, kh, kw = weight.shape
    n, c, h, w = x.shape
    assert c == in_planes

    h_out = (h + 2 * padding - dilation * (kh - 1) - 1) // stride + 1
    w_out = (w + 2 * padding - dilation * (kw - 1) - 1) // stride + 1
    hp = h + 2 * padding
    wp = w + 2 * padding

    # Lane-dense padding for the MXU operands only (zeros contribute nothing to
    # the dot products or the BN sums, so results stay exact).
    cpi = _round_up(in_planes, 128)      # contraction dim per tap
    c_mxu = _round_up(out_planes, 128)   # MXU RHS width
    c_y = out_planes                     # y / stats lane width (no output pad)

    # NCHW -> spatially padded NHWC, channel-padded, bf16.
    xs = jnp.transpose(x, (0, 2, 3, 1)).astype(jnp.bfloat16)
    xs = jnp.pad(xs, ((0, 0), (padding, padding), (padding, padding),
                      (0, cpi - in_planes)))
    # (C_out, C_in, KH, KW) -> (KH*KW, C_in_pad, C_out_pad), bf16.
    wmat = jnp.transpose(weight, (2, 3, 1, 0)).astype(jnp.float32)
    wmat = jnp.pad(wmat, ((0, 0), (0, 0), (0, cpi - in_planes),
                          (0, c_mxu - out_planes)))
    wmat = wmat.reshape(kh * kw, cpi, c_mxu).astype(jnp.bfloat16)

    # ---- VMEM-budget-derived row tiling -------------------------------------
    cap = _vmem_capacity_bytes()
    budget = int(cap * 0.70)                 # headroom for compiler scratch
    x_bytes = hp * wp * cpi * 2              # bf16 input slab (per batch item)
    w_bytes = kh * kw * cpi * c_mxu * 2      # resident weights (bf16)
    stat_bytes = 8 * c_y * 4
    fixed = 2 * x_bytes + 2 * w_bytes + 4 * stat_bytes
    per_row = 2 * w_out * c_y * 2            # double-buffered bf16 y rows
    avail = budget - fixed
    if avail >= per_row * h_out:
        th = h_out
    elif avail > per_row:
        th = int(max(1, min(h_out, avail // per_row)))
    else:
        th = min(8, h_out)
    ht = -(-h_out // th)                     # number of row tiles
    need = fixed + per_row * th
    vmem_limit = int(min(max(need + (4 << 20), 32 << 20), cap))

    # ---- Pallas kernel: implicit-im2col direct conv + per-tile BN partials --
    def kernel(x_ref, w_ref, y_ref, sum_ref, sq_ref):
        t = pl.program_id(1)
        base = t * th
        nrows = jnp.minimum(th, h_out - base)   # valid output rows in this tile

        def w_slice(kj):
            start = kj * dilation
            if stride == 1:
                return pl.ds(start, w_out)
            return pl.ds(start, w_out, stride)

        def row_body(r, carry):
            s_acc, q_acc = carry
            hr0 = (base + r) * stride
            acc = jnp.zeros((w_out, c_mxu), jnp.float32)
            for ki in range(kh):                # static unroll over kernel taps
                for kj in range(kw):
                    lhs = x_ref[hr0 + ki * dilation, w_slice(kj), :]
                    acc = acc + jnp.dot(lhs, w_ref[ki * kw + kj],
                                        preferred_element_type=jnp.float32)
            out = acc[:, :c_y]                  # drop MXU channel padding
            y_ref[r] = out.astype(y_ref.dtype)  # bf16 writeback
            s_acc = s_acc + jnp.sum(out, axis=0, keepdims=True)
            q_acc = q_acc + jnp.sum(out * out, axis=0, keepdims=True)
            return s_acc, q_acc

        zero = jnp.zeros((1, c_y), jnp.float32)
        s, q = lax.fori_loop(0, nrows, row_body, (zero, zero))
        sum_ref[...] = jnp.broadcast_to(s, sum_ref.shape)
        sq_ref[...] = jnp.broadcast_to(q, sq_ref.shape)

    out_shapes = (jax.ShapeDtypeStruct((n, ht * th, w_out, c_y), jnp.bfloat16),
                  jax.ShapeDtypeStruct((n * ht * 8, c_y), jnp.float32),
                  jax.ShapeDtypeStruct((n * ht * 8, c_y), jnp.float32))

    def run(single_buffer_weight):
        w_kwargs = {}
        if single_buffer_weight:
            # Constant block index -> double-buffering the weights only wastes VMEM.
            w_kwargs = dict(pipeline_mode=pl.Buffered(1))
        grid_spec = pltpu.PrefetchScalarGridSpec(
            num_scalar_prefetch=0,
            grid=(n, ht),
            in_specs=[
                pl.BlockSpec((None, hp, wp, cpi), lambda b, t: (b, 0, 0, 0)),
                pl.BlockSpec((kh * kw, cpi, c_mxu), lambda b, t: (0, 0, 0),
                             **w_kwargs),
            ],
            out_specs=(
                pl.BlockSpec((None, th, w_out, c_y), lambda b, t: (b, t, 0, 0)),
                pl.BlockSpec((8, c_y), lambda b, t: (b * ht + t, 0)),
                pl.BlockSpec((8, c_y), lambda b, t: (b * ht + t, 0)),
            ))
        res = pl.pallas_call(
            kernel,
            out_shape=out_shapes,
            grid_spec=grid_spec,
            compiler_params=pltpu.CompilerParams(
                dimension_semantics=("parallel", "arbitrary"),
                vmem_limit_bytes=vmem_limit),
        )(xs, wmat)
        return jax.block_until_ready(res)

    try:
        y, sums, sqs = run(True)
    except Exception:
        # pipeline_mode=pl.Buffered(1) unsupported on this version -> default buffering.
        y, sums, sqs = run(False)

    # ---- Tiny final reduction of per-tile BN partials (f32) ------------------
    count = n * h_out * w_out
    s = sums.reshape(n * ht, 8, c_y)[:, 0, :].sum(axis=0)
    sq = sqs.reshape(n * ht, 8, c_y)[:, 0, :].sum(axis=0)

    if bn:
        mean = s / count
        # Train-mode (biased) variance, computed in f32 from the f32 conv
        # accumulator. Clamp guards E[y^2]-E[y]^2 cancellation.
        # TODO(synk): a shifted / Welford-style combine would be more robust for
        # channels with |mean| >> std.
        var = jnp.maximum(sq / count - mean * mean, 0.0)
        inv = lax.rsqrt(var + eps)
        scale = gamma.astype(jnp.float32) * inv
        shift = beta.astype(jnp.float32) - mean * scale
    else:
        scale = jnp.ones((out_planes,), jnp.float32)
        shift = jnp.zeros((out_planes,), jnp.float32)

    # Fused XLA epilogue: per-channel affine (+ReLU) + NHWC->NCHW in one HBM pass.
    yf = y[:, :h_out].astype(jnp.float32) * scale + shift
    if relu:
        yf = jnp.maximum(yf, 0.0)
    return jnp.transpose(yf, (0, 3, 1, 2))


def _reference(x, weight, gamma, beta, stride, padding, dilation, eps, relu, bn):
    y = lax.conv_general_dilated(
        x.astype(jnp.float32), weight.astype(jnp.float32),
        window_strides=(stride, stride),
        padding=((padding, padding), (padding, padding)),
        rhs_dilation=(dilation, dilation),
        dimension_numbers=("NCHW", "OIHW", "NCHW"),
        precision=lax.Precision.HIGHEST)
    if bn:
        mean = y.mean(axis=(0, 2, 3), keepdims=True)
        var = ((y - mean) ** 2).mean(axis=(0, 2, 3), keepdims=True)
        y = (y - mean) * lax.rsqrt(var + eps)
        y = y * gamma.reshape(1, -1, 1, 1) + beta.reshape(1, -1, 1, 1)
    if relu:
        y = jnp.maximum(y, 0.0)
    return y


if __name__ == "__main__":
    # BasicConv(in_planes=4, out_planes=8, kernel_size=3, stride=1, padding=1)
    N, C_IN, C_OUT, H, W, K = 2, 4, 8, 16, 16, 3
    STRIDE, PAD, DIL = 1, 1, 1

    key = jax.random.PRNGKey(0)
    k_x, k_w, k_g, k_b = jax.random.split(key, 4)
    x = jax.random.normal(k_x, (N, C_IN, H, W), dtype=jnp.float32)
    weight = 0.1 * jax.random.normal(k_w, (C_OUT, C_IN, K, K), dtype=jnp.float32)
    gamma = 1.0 + 0.1 * jax.random.normal(k_g, (C_OUT,), dtype=jnp.float32)
    beta = 0.1 * jax.random.normal(k_b, (C_OUT,), dtype=jnp.float32)

    out = basic_conv(x, weight, gamma, beta, stride=STRIDE, padding=PAD,
                     dilation=DIL, relu=True, bn=True)
    out = jax.block_until_ready(out)

    ref = _reference(x, weight, gamma, beta, STRIDE, PAD, DIL, 1e-5, True, True)
    assert out.shape == (N, C_OUT, H, W), out.shape
    err = float(jnp.max(jnp.abs(out - ref)))
    # bf16 MXU operands + bf16 y writeback (f32 accumulation) vs f32 reference.
    assert err < 6e-2, err
    print("KERNEL_OK")
</pallas_src>

<mosaic_0001>
module attributes {stable_mosaic.version = 11 : i64} {
  func.func @kernel(%arg0: i32, %arg1: i32, %arg2: memref<1x18x18x128xbf16, #tpu.memory_space<vmem>>, %arg3: memref<9x128x128xbf16, #tpu.memory_space<vmem>>, %arg4: memref<1x16x16x8xbf16, #tpu.memory_space<vmem>>, %arg5: memref<8x8xf32, #tpu.memory_space<vmem>>, %arg6: memref<8x8xf32, #tpu.memory_space<vmem>>) attributes {dimension_semantics = [#tpu.dimension_semantics<parallel>, #tpu.dimension_semantics<arbitrary>], iteration_bounds = array<i64: 2, 1>, scalar_prefetch = 0 : i64, scratch_operands = 0 : i64, tpu.core_type = #tpu.core_type<tc>, window_params = [{transform_indices = @transform_0, window_bounds = array<i64: 1, 18, 18, 128>}, {pipeline_mode = #tpu.pipeline_mode<synchronous>, transform_indices = @transform_1, window_bounds = array<i64: 9, 128, 128>}, {transform_indices = @transform_2, window_bounds = array<i64: 1, 16, 16, 8>}, {transform_indices = @transform_3, window_bounds = array<i64: 8, 8>}, {transform_indices = @transform_4, window_bounds = array<i64: 8, 8>}]} {
    %c16_i32 = arith.constant 16 : i32
    %0 = arith.muli %arg1, %c16_i32 : i32
    %c16_i32_0 = arith.constant 16 : i32
    %1 = arith.subi %c16_i32_0, %0 : i32
    %c16_i32_1 = arith.constant 16 : i32
    %2 = arith.minsi %c16_i32_1, %1 : i32
    %cst = arith.constant 0.000000e+00 : f32
    %3 = vector.broadcast %cst : f32 to vector<1x8xf32>
    %c0_i32 = arith.constant 0 : i32
    %4 = arith.subi %2, %c0_i32 : i32
    %5 = arith.addi %c0_i32, %4 : i32
    %c1_i32 = arith.constant 1 : i32
    %6:2 = scf.for %arg7 = %c0_i32 to %5 step %c1_i32 iter_args(%arg8 = %3, %arg9 = %3) -> (vector<1x8xf32>, vector<1x8xf32>)  : i32 {
      %13 = arith.addi %0, %arg7 : i32
      %c1_i32_5 = arith.constant 1 : i32
      %14 = arith.muli %13, %c1_i32_5 : i32
      %cst_6 = arith.constant 0.000000e+00 : f32
      %15 = vector.broadcast %cst_6 : f32 to vector<16x128xf32>
      %c0_i32_7 = arith.constant 0 : i32
      %16 = arith.addi %14, %c0_i32_7 : i32
      %c0_8 = arith.constant 0 : index
      %17 = arith.index_cast %16 : i32 to index
      %c0_9 = arith.constant 0 : index
      %c0_10 = arith.constant 0 : index
      %18 = vector.load %arg2[%c0_8, %17, %c0_9, %c0_10] : memref<1x18x18x128xbf16, #tpu.memory_space<vmem>>, vector<1x1x16x128xbf16>
      %19 = vector.shape_cast %18 : vector<1x1x16x128xbf16> to vector<16x128xbf16>
      %c0_11 = arith.constant 0 : index
      %c0_12 = arith.constant 0 : index
      %c0_13 = arith.constant 0 : index
      %20 = vector.load %arg3[%c0_11, %c0_12, %c0_13] : memref<9x128x128xbf16, #tpu.memory_space<vmem>>, vector<1x128x128xbf16>
      %21 = vector.shape_cast %20 : vector<1x128x128xbf16> to vector<128x128xbf16>
      %cst_14 = arith.constant dense<0.000000e+00> : vector<16x128xf32>
      %22 = tpu.matmul %19, %21, %cst_14 {dimension_numbers = #tpu.dot_dimension_numbers<[1], [0], [0], [1], [0, 0, 1, 1], [], []>} : vector<16x128xbf16>, vector<128x128xbf16>, vector<16x128xf32> -> vector<16x128xf32>
      %23 = arith.addf %15, %22 : vector<16x128xf32>
      %c0_i32_15 = arith.constant 0 : i32
      %24 = arith.addi %14, %c0_i32_15 : i32
      %c0_16 = arith.constant 0 : index
      %25 = arith.index_cast %24 : i32 to index
      %c1 = arith.constant 1 : index
      %c0_17 = arith.constant 0 : index
      %26 = vector.load %arg2[%c0_16, %25, %c1, %c0_17] : memref<1x18x18x128xbf16, #tpu.memory_space<vmem>>, vector<1x1x16x128xbf16>
      %27 = vector.shape_cast %26 : vector<1x1x16x128xbf16> to vector<16x128xbf16>
      %c1_18 = arith.constant 1 : index
      %c0_19 = arith.constant 0 : index
      %c0_20 = arith.constant 0 : index
      %28 = vector.load %arg3[%c1_18, %c0_19, %c0_20] : memref<9x128x128xbf16, #tpu.memory_space<vmem>>, vector<1x128x128xbf16>
      %29 = vector.shape_cast %28 : vector<1x128x128xbf16> to vector<128x128xbf16>
      %cst_21 = arith.constant dense<0.000000e+00> : vector<16x128xf32>
      %30 = tpu.matmul %27, %29, %cst_21 {dimension_numbers = #tpu.dot_dimension_numbers<[1], [0], [0], [1], [0, 0, 1, 1], [], []>} : vector<16x128xbf16>, vector<128x128xbf16>, vector<16x128xf32> -> vector<16x128xf32>
      %31 = arith.addf %23, %30 : vector<16x128xf32>
      %c0_i32_22 = arith.constant 0 : i32
      %32 = arith.addi %14, %c0_i32_22 : i32
      %c0_23 = arith.constant 0 : index
      %33 = arith.index_cast %32 : i32 to index
      %c2 = arith.constant 2 : index
      %c0_24 = arith.constant 0 : index
      %34 = vector.load %arg2[%c0_23, %33, %c2, %c0_24] : memref<1x18x18x128xbf16, #tpu.memory_space<vmem>>, vector<1x1x16x128xbf16>
      %35 = vector.shape_cast %34 : vector<1x1x16x128xbf16> to vector<16x128xbf16>
      %c2_25 = arith.constant 2 : index
      %c0_26 = arith.constant 0 : index
      %c0_27 = arith.constant 0 : index
      %36 = vector.load %arg3[%c2_25, %c0_26, %c0_27] : memref<9x128x128xbf16, #tpu.memory_space<vmem>>, vector<1x128x128xbf16>
      %37 = vector.shape_cast %36 : vector<1x128x128xbf16> to vector<128x128xbf16>
      %cst_28 = arith.constant dense<0.000000e+00> : vector<16x128xf32>
      %38 = tpu.matmul %35, %37, %cst_28 {dimension_numbers = #tpu.dot_dimension_numbers<[1], [0], [0], [1], [0, 0, 1, 1], [], []>} : vector<16x128xbf16>, vector<128x128xbf16>, vector<16x128xf32> -> vector<16x128xf32>
      %39 = arith.addf %31, %38 : vector<16x128xf32>
      %c1_i32_29 = arith.constant 1 : i32
      %40 = arith.addi %14, %c1_i32_29 : i32
      %c0_30 = arith.constant 0 : index
      %41 = arith.index_cast %40 : i32 to index
      %c0_31 = arith.constant 0 : index
      %c0_32 = arith.constant 0 : index
      %42 = vector.load %arg2[%c0_30, %41, %c0_31, %c0_32] : memref<1x18x18x128xbf16, #tpu.memory_space<vmem>>, vector<1x1x16x128xbf16>
      %43 = vector.shape_cast %42 : vector<1x1x16x128xbf16> to vector<16x128xbf16>
      %c3 = arith.constant 3 : index
      %c0_33 = arith.constant 0 : index
      %c0_34 = arith.constant 0 : index
      %44 = vector.load %arg3[%c3, %c0_33, %c0_34] : memref<9x128x128xbf16, #tpu.memory_space<vmem>>, vector<1x128x128xbf16>
      %45 = vector.shape_cast %44 : vector<1x128x128xbf16> to vector<128x128xbf16>
      %cst_35 = arith.constant dense<0.000000e+00> : vector<16x128xf32>
      %46 = tpu.matmul %43, %45, %cst_35 {dimension_numbers = #tpu.dot_dimension_numbers<[1], [0], [0], [1], [0, 0, 1, 1], [], []>} : vector<16x128xbf16>, vector<128x128xbf16>, vector<16x128xf32> -> vector<16x128xf32>
      %47 = arith.addf %39, %46 : vector<16x128xf32>
      %c1_i32_36 = arith.constant 1 : i32
      %48 = arith.addi %14, %c1_i32_36 : i32
      %c0_37 = arith.constant 0 : index
      %49 = arith.index_cast %48 : i32 to index
      %c1_38 = arith.constant 1 : index
      %c0_39 = arith.constant 0 : index
      %50 = vector.load %arg2[%c0_37, %49, %c1_38, %c0_39] : memref<1x18x18x128xbf16, #tpu.memory_space<vmem>>, vector<1x1x16x128xbf16>
      %51 = vector.shape_cast %50 : vector<1x1x16x128xbf16> to vector<16x128xbf16>
      %c4 = arith.constant 4 : index
      %c0_40 = arith.constant 0 : index
      %c0_41 = arith.constant 0 : index
      %52 = vector.load %arg3[%c4, %c0_40, %c0_41] : memref<9x128x128xbf16, #tpu.memory_space<vmem>>, vector<1x128x128xbf16>
      %53 = vector.shape_cast %52 : vector<1x128x128xbf16> to vector<128x128xbf16>
      %cst_42 = arith.constant dense<0.000000e+00> : vector<16x128xf32>
      %54 = tpu.matmul %51, %53, %cst_42 {dimension_numbers = #tpu.dot_dimension_numbers<[1], [0], [0], [1], [0, 0, 1, 1], [], []>} : vector<16x128xbf16>, vector<128x128xbf16>, vector<16x128xf32> -> vector<16x128xf32>
      %55 = arith.addf %47, %54 : vector<16x128xf32>
      %c1_i32_43 = arith.constant 1 : i32
      %56 = arith.addi %14, %c1_i32_43 : i32
      %c0_44 = arith.constant 0 : index
      %57 = arith.index_cast %56 : i32 to index
      %c2_45 = arith.constant 2 : index
      %c0_46 = arith.constant 0 : index
      %58 = vector.load %arg2[%c0_44, %57, %c2_45, %c0_46] : memref<1x18x18x128xbf16, #tpu.memory_space<vmem>>, vector<1x1x16x128xbf16>
      %59 = vector.shape_cast %58 : vector<1x1x16x128xbf16> to vector<16x128xbf16>
      %c5 = arith.constant 5 : index
      %c0_47 = arith.constant 0 : index
      %c0_48 = arith.constant 0 : index
      %60 = vector.load %arg3[%c5, %c0_47, %c0_48] : memref<9x128x128xbf16, #tpu.memory_space<vmem>>, vector<1x128x128xbf16>
      %61 = vector.shape_cast %60 : vector<1x128x128xbf16> to vector<128x128xbf16>
      %cst_49 = arith.constant dense<0.000000e+00> : vector<16x128xf32>
      %62 = tpu.matmul %59, %61, %cst_49 {dimension_numbers = #tpu.dot_dimension_numbers<[1], [0], [0], [1], [0, 0, 1, 1], [], []>} : vector<16x128xbf16>, vector<128x128xbf16>, vector<16x128xf32> -> vector<16x128xf32>
      %63 = arith.addf %55, %62 : vector<16x128xf32>
      %c2_i32 = arith.constant 2 : i32
      %64 = arith.addi %14, %c2_i32 : i32
      %c0_50 = arith.constant 0 : index
      %65 = arith.index_cast %64 : i32 to index
      %c0_51 = arith.constant 0 : index
      %c0_52 = arith.constant 0 : index
      %66 = vector.load %arg2[%c0_50, %65, %c0_51, %c0_52] : memref<1x18x18x128xbf16, #tpu.memory_space<vmem>>, vector<1x1x16x128xbf16>
      %67 = vector.shape_cast %66 : vector<1x1x16x128xbf16> to vector<16x128xbf16>
      %c6 = arith.constant 6 : index
      %c0_53 = arith.constant 0 : index
      %c0_54 = arith.constant 0 : index
      %68 = vector.load %arg3[%c6, %c0_53, %c0_54] : memref<9x128x128xbf16, #tpu.memory_space<vmem>>, vector<1x128x128xbf16>
      %69 = vector.shape_cast %68 : vector<1x128x128xbf16> to vector<128x128xbf16>
      %cst_55 = arith.constant dense<0.000000e+00> : vector<16x128xf32>
      %70 = tpu.matmul %67, %69, %cst_55 {dimension_numbers = #tpu.dot_dimension_numbers<[1], [0], [0], [1], [0, 0, 1, 1], [], []>} : vector<16x128xbf16>, vector<128x128xbf16>, vector<16x128xf32> -> vector<16x128xf32>
      %71 = arith.addf %63, %70 : vector<16x128xf32>
      %c2_i32_56 = arith.constant 2 : i32
      %72 = arith.addi %14, %c2_i32_56 : i32
      %c0_57 = arith.constant 0 : index
      %73 = arith.index_cast %72 : i32 to index
      %c1_58 = arith.constant 1 : index
      %c0_59 = arith.constant 0 : index
      %74 = vector.load %arg2[%c0_57, %73, %c1_58, %c0_59] : memref<1x18x18x128xbf16, #tpu.memory_space<vmem>>, vector<1x1x16x128xbf16>
      %75 = vector.shape_cast %74 : vector<1x1x16x128xbf16> to vector<16x128xbf16>
      %c7 = arith.constant 7 : index
      %c0_60 = arith.constant 0 : index
      %c0_61 = arith.constant 0 : index
      %76 = vector.load %arg3[%c7, %c0_60, %c0_61] : memref<9x128x128xbf16, #tpu.memory_space<vmem>>, vector<1x128x128xbf16>
      %77 = vector.shape_cast %76 : vector<1x128x128xbf16> to vector<128x128xbf16>
      %cst_62 = arith.constant dense<0.000000e+00> : vector<16x128xf32>
      %78 = tpu.matmul %75, %77, %cst_62 {dimension_numbers = #tpu.dot_dimension_numbers<[1], [0], [0], [1], [0, 0, 1, 1], [], []>} : vector<16x128xbf16>, vector<128x128xbf16>, vector<16x128xf32> -> vector<16x128xf32>
      %79 = arith.addf %71, %78 : vector<16x128xf32>
      %c2_i32_63 = arith.constant 2 : i32
      %80 = arith.addi %14, %c2_i32_63 : i32
      %c0_64 = arith.constant 0 : index
      %81 = arith.index_cast %80 : i32 to index
      %c2_65 = arith.constant 2 : index
      %c0_66 = arith.constant 0 : index
      %82 = vector.load %arg2[%c0_64, %81, %c2_65, %c0_66] : memref<1x18x18x128xbf16, #tpu.memory_space<vmem>>, vector<1x1x16x128xbf16>
      %83 = vector.shape_cast %82 : vector<1x1x16x128xbf16> to vector<16x128xbf16>
      %c8 = arith.constant 8 : index
      %c0_67 = arith.constant 0 : index
      %c0_68 = arith.constant 0 : index
      %84 = vector.load %arg3[%c8, %c0_67, %c0_68] : memref<9x128x128xbf16, #tpu.memory_space<vmem>>, vector<1x128x128xbf16>
      %85 = vector.shape_cast %84 : vector<1x128x128xbf16> to vector<128x128xbf16>
      %cst_69 = arith.constant dense<0.000000e+00> : vector<16x128xf32>
      %86 = tpu.matmul %83, %85, %cst_69 {dimension_numbers = #tpu.dot_dimension_numbers<[1], [0], [0], [1], [0, 0, 1, 1], [], []>} : vector<16x128xbf16>, vector<128x128xbf16>, vector<16x128xf32> -> vector<16x128xf32>
      %87 = arith.addf %79, %86 : vector<16x128xf32>
      %88 = vector.extract_strided_slice %87 {offsets = [0, 0], sizes = [16, 8], strides = [1, 1]} : vector<16x128xf32> to vector<16x8xf32>
      %89 = arith.truncf %88 : vector<16x8xf32> to vector<16x8xbf16>
      %c0_70 = arith.constant 0 : index
      %90 = arith.index_cast %arg7 : i32 to index
      %c0_71 = arith.constant 0 : index
      %c0_72 = arith.constant 0 : index
      %91 = vector.load %arg4[%c0_70, %90, %c0_71, %c0_72] : memref<1x16x16x8xbf16, #tpu.memory_space<vmem>>, vector<1x1x16x8xbf16>
      %92 = vector.shape_cast %91 : vector<1x1x16x8xbf16> to vector<16x8xbf16>
      %93 = vector.shape_cast %89 : vector<16x8xbf16> to vector<1x1x16x8xbf16>
      tpu.vector_store %arg4[%c0_70, %90, %c0_71, %c0_72], %93 {strides = array<i32>} : memref<1x16x16x8xbf16, #tpu.memory_space<vmem>>, vector<1x1x16x8xbf16>,
      %cst_73 = arith.constant dense<0.000000e+00> : vector<8xf32>
      %94 = vector.multi_reduction <add>, %88, %cst_73 [0] : vector<16x8xf32> to vector<8xf32>
      %95 = vector.shape_cast %94 : vector<8xf32> to vector<1x8xf32>
      %96 = arith.addf %arg8, %95 : vector<1x8xf32>
      %97 = arith.mulf %88, %88 : vector<16x8xf32>
      %cst_74 = arith.constant dense<0.000000e+00> : vector<8xf32>
      %98 = vector.multi_reduction <add>, %97, %cst_74 [0] : vector<16x8xf32> to vector<8xf32>
      %99 = vector.shape_cast %98 : vector<8xf32> to vector<1x8xf32>
      %100 = arith.addf %arg9, %99 : vector<1x8xf32>
      scf.yield %96, %100 : vector<1x8xf32>, vector<1x8xf32>
    }
    %7 = vector.shape_cast %6#0 : vector<1x8xf32> to vector<1x8xf32>
    %8 = vector.broadcast %7 : vector<1x8xf32> to vector<8x8xf32>
    %c0 = arith.constant 0 : index
    %c0_2 = arith.constant 0 : index
    %9 = vector.load %arg5[%c0, %c0_2] : memref<8x8xf32, #tpu.memory_space<vmem>>, vector<8x8xf32>
    tpu.vector_store %arg5[%c0, %c0_2], %8 {strides = array<i32>} : memref<8x8xf32, #tpu.memory_space<vmem>>, vector<8x8xf32>,
    %10 = vector.shape_cast %6#1 : vector<1x8xf32> to vector<1x8xf32>
    %11 = vector.broadcast %10 : vector<1x8xf32> to vector<8x8xf32>
    %c0_3 = arith.constant 0 : index
    %c0_4 = arith.constant 0 : index
    %12 = vector.load %arg6[%c0_3, %c0_4] : memref<8x8xf32, #tpu.memory_space<vmem>>, vector<8x8xf32>
    tpu.vector_store %arg6[%c0_3, %c0_4], %11 {strides = array<i32>} : memref<8x8xf32, #tpu.memory_space<vmem>>, vector<8x8xf32>,
    return
  }
  func.func @transform_0(%arg0: i32, %arg1: i32) -> (i32, i32, i32, i32) {
    %c0_i32 = arith.constant 0 : i32
    %c0_i32_0 = arith.constant 0 : i32
    %c0_i32_1 = arith.constant 0 : i32
    %c0_i32_2 = arith.constant 0 : i32
    return %arg0, %c0_i32, %c0_i32_0, %c0_i32_1 : i32, i32, i32, i32
  }
  func.func @transform_1(%arg0: i32, %arg1: i32) -> (i32, i32, i32) {
    %c0_i32 = arith.constant 0 : i32
    %c0_i32_0 = arith.constant 0 : i32
    %c0_i32_1 = arith.constant 0 : i32
    %c0_i32_2 = arith.constant 0 : i32
    return %c0_i32, %c0_i32_0, %c0_i32_1 : i32, i32, i32
  }
  func.func @transform_2(%arg0: i32, %arg1: i32) -> (i32, i32, i32, i32) {
    %c0_i32 = arith.constant 0 : i32
    %c0_i32_0 = arith.constant 0 : i32
    %c0_i32_1 = arith.constant 0 : i32
    return %arg0, %arg1, %c0_i32, %c0_i32_0 : i32, i32, i32, i32
  }
  func.func @transform_3(%arg0: i32, %arg1: i32) -> (i32, i32) {
    %c1_i32 = arith.constant 1 : i32
    %0 = arith.muli %arg0, %c1_i32 : i32
    %1 = arith.addi %0, %arg1 : i32
    %c0_i32 = arith.constant 0 : i32
    %c0_i32_0 = arith.constant 0 : i32
    return %1, %c0_i32 : i32, i32
  }
  func.func @transform_4(%arg0: i32, %arg1: i32) -> (i32, i32) {
    %c1_i32 = arith.constant 1 : i32
    %0 = arith.muli %arg0, %c1_i32 : i32
    %1 = arith.addi %0, %arg1 : i32
    %c0_i32 = arith.constant 0 : i32
    %c0_i32_0 = arith.constant 0 : i32
    return %1, %c0_i32 : i32, i32
  }
}

module attributes {stable_mosaic.version = 11 : i64} {
  func.func @kernel(%arg0: i32, %arg1: i32, %arg2: memref<1x18x18x128xbf16, #tpu.memory_space<vmem>>, %arg3: memref<9x128x128xbf16, #tpu.memory_space<vmem>>, %arg4: memref<1x16x16x8xbf16, #tpu.memory_space<vmem>>, %arg5: memref<8x8xf32, #tpu.memory_space<vmem>>, %arg6: memref<8x8xf32, #tpu.memory_space<vmem>>) attributes {dimension_semantics = [#tpu.dimension_semantics<parallel>, #tpu.dimension_semantics<arbitrary>], iteration_bounds = array<i64: 2, 1>, scalar_prefetch = 0 : i64, scratch_operands = 0 : i64, tpu.core_type = #tpu.core_type<tc>, window_params = [{transform_indices = @transform_0, window_bounds = array<i64: 1, 18, 18, 128>}, {pipeline_mode = #tpu.pipeline_mode<synchronous>, transform_indices = @transform_1, window_bounds = array<i64: 9, 128, 128>}, {transform_indices = @transform_2, window_bounds = array<i64: 1, 16, 16, 8>}, {transform_indices = @transform_3, window_bounds = array<i64: 8, 8>}, {transform_indices = @transform_4, window_bounds = array<i64: 8, 8>}]} {
    %c16_i32 = arith.constant 16 : i32
    %0 = arith.muli %arg1, %c16_i32 : i32
    %c16_i32_0 = arith.constant 16 : i32
    %1 = arith.subi %c16_i32_0, %0 : i32
    %c16_i32_1 = arith.constant 16 : i32
    %2 = arith.minsi %c16_i32_1, %1 : i32
    %cst = arith.constant 0.000000e+00 : f32
    %3 = vector.broadcast %cst : f32 to vector<1x8xf32>
    %c0_i32 = arith.constant 0 : i32
    %4 = arith.subi %2, %c0_i32 : i32
    %5 = arith.addi %c0_i32, %4 : i32
    %c1_i32 = arith.constant 1 : i32
    %6:2 = scf.for %arg7 = %c0_i32 to %5 step %c1_i32 iter_args(%arg8 = %3, %arg9 = %3) -> (vector<1x8xf32>, vector<1x8xf32>)  : i32 {
      %13 = arith.addi %0, %arg7 : i32
      %c1_i32_5 = arith.constant 1 : i32
      %14 = arith.muli %13, %c1_i32_5 : i32
      %cst_6 = arith.constant 0.000000e+00 : f32
      %15 = vector.broadcast %cst_6 : f32 to vector<16x128xf32>
      %c0_i32_7 = arith.constant 0 : i32
      %16 = arith.addi %14, %c0_i32_7 : i32
      %c0_8 = arith.constant 0 : index
      %17 = arith.index_cast %16 : i32 to index
      %c0_9 = arith.constant 0 : index
      %c0_10 = arith.constant 0 : index
      %18 = vector.load %arg2[%c0_8, %17, %c0_9, %c0_10] : memref<1x18x18x128xbf16, #tpu.memory_space<vmem>>, vector<1x1x16x128xbf16>
      %19 = vector.shape_cast %18 : vector<1x1x16x128xbf16> to vector<16x128xbf16>
      %c0_11 = arith.constant 0 : index
      %c0_12 = arith.constant 0 : index
      %c0_13 = arith.constant 0 : index
      %20 = vector.load %arg3[%c0_11, %c0_12, %c0_13] : memref<9x128x128xbf16, #tpu.memory_space<vmem>>, vector<1x128x128xbf16>
      %21 = vector.shape_cast %20 : vector<1x128x128xbf16> to vector<128x128xbf16>
      %cst_14 = arith.constant dense<0.000000e+00> : vector<16x128xf32>
      %22 = tpu.matmul %19, %21, %cst_14 {dimension_numbers = #tpu.dot_dimension_numbers<[1], [0], [0], [1], [0, 0, 1, 1], [], []>} : vector<16x128xbf16>, vector<128x128xbf16>, vector<16x128xf32> -> vector<16x128xf32>
      %23 = arith.addf %15, %22 : vector<16x128xf32>
      %c0_i32_15 = arith.constant 0 : i32
      %24 = arith.addi %14, %c0_i32_15 : i32
      %c0_16 = arith.constant 0 : index
      %25 = arith.index_cast %24 : i32 to index
      %c1 = arith.constant 1 : index
      %c0_17 = arith.constant 0 : index
      %26 = vector.load %arg2[%c0_16, %25, %c1, %c0_17] : memref<1x18x18x128xbf16, #tpu.memory_space<vmem>>, vector<1x1x16x128xbf16>
      %27 = vector.shape_cast %26 : vector<1x1x16x128xbf16> to vector<16x128xbf16>
      %c1_18 = arith.constant 1 : index
      %c0_19 = arith.constant 0 : index
      %c0_20 = arith.constant 0 : index
      %28 = vector.load %arg3[%c1_18, %c0_19, %c0_20] : memref<9x128x128xbf16, #tpu.memory_space<vmem>>, vector<1x128x128xbf16>
      %29 = vector.shape_cast %28 : vector<1x128x128xbf16> to vector<128x128xbf16>
      %cst_21 = arith.constant dense<0.000000e+00> : vector<16x128xf32>
      %30 = tpu.matmul %27, %29, %cst_21 {dimension_numbers = #tpu.dot_dimension_numbers<[1], [0], [0], [1], [0, 0, 1, 1], [], []>} : vector<16x128xbf16>, vector<128x128xbf16>, vector<16x128xf32> -> vector<16x128xf32>
      %31 = arith.addf %23, %30 : vector<16x128xf32>
      %c0_i32_22 = arith.constant 0 : i32
      %32 = arith.addi %14, %c0_i32_22 : i32
      %c0_23 = arith.constant 0 : index
      %33 = arith.index_cast %32 : i32 to index
      %c2 = arith.constant 2 : index
      %c0_24 = arith.constant 0 : index
      %34 = vector.load %arg2[%c0_23, %33, %c2, %c0_24] : memref<1x18x18x128xbf16, #tpu.memory_space<vmem>>, vector<1x1x16x128xbf16>
      %35 = vector.shape_cast %34 : vector<1x1x16x128xbf16> to vector<16x128xbf16>
      %c2_25 = arith.constant 2 : index
      %c0_26 = arith.constant 0 : index
      %c0_27 = arith.constant 0 : index
      %36 = vector.load %arg3[%c2_25, %c0_26, %c0_27] : memref<9x128x128xbf16, #tpu.memory_space<vmem>>, vector<1x128x128xbf16>
      %37 = vector.shape_cast %36 : vector<1x128x128xbf16> to vector<128x128xbf16>
      %cst_28 = arith.constant dense<0.000000e+00> : vector<16x128xf32>
      %38 = tpu.matmul %35, %37, %cst_28 {dimension_numbers = #tpu.dot_dimension_numbers<[1], [0], [0], [1], [0, 0, 1, 1], [], []>} : vector<16x128xbf16>, vector<128x128xbf16>, vector<16x128xf32> -> vector<16x128xf32>
      %39 = arith.addf %31, %38 : vector<16x128xf32>
      %c1_i32_29 = arith.constant 1 : i32
      %40 = arith.addi %14, %c1_i32_29 : i32
      %c0_30 = arith.constant 0 : index
      %41 = arith.index_cast %40 : i32 to index
      %c0_31 = arith.constant 0 : index
      %c0_32 = arith.constant 0 : index
      %42 = vector.load %arg2[%c0_30, %41, %c0_31, %c0_32] : memref<1x18x18x128xbf16, #tpu.memory_space<vmem>>, vector<1x1x16x128xbf16>
      %43 = vector.shape_cast %42 : vector<1x1x16x128xbf16> to vector<16x128xbf16>
      %c3 = arith.constant 3 : index
      %c0_33 = arith.constant 0 : index
      %c0_34 = arith.constant 0 : index
      %44 = vector.load %arg3[%c3, %c0_33, %c0_34] : memref<9x128x128xbf16, #tpu.memory_space<vmem>>, vector<1x128x128xbf16>
      %45 = vector.shape_cast %44 : vector<1x128x128xbf16> to vector<128x128xbf16>
      %cst_35 = arith.constant dense<0.000000e+00> : vector<16x128xf32>
      %46 = tpu.matmul %43, %45, %cst_35 {dimension_numbers = #tpu.dot_dimension_numbers<[1], [0], [0], [1], [0, 0, 1, 1], [], []>} : vector<16x128xbf16>, vector<128x128xbf16>, vector<16x128xf32> -> vector<16x128xf32>
      %47 = arith.addf %39, %46 : vector<16x128xf32>
      %c1_i32_36 = arith.constant 1 : i32
      %48 = arith.addi %14, %c1_i32_36 : i32
      %c0_37 = arith.constant 0 : index
      %49 = arith.index_cast %48 : i32 to index
      %c1_38 = arith.constant 1 : index
      %c0_39 = arith.constant 0 : index
      %50 = vector.load %arg2[%c0_37, %49, %c1_38, %c0_39] : memref<1x18x18x128xbf16, #tpu.memory_space<vmem>>, vector<1x1x16x128xbf16>
      %51 = vector.shape_cast %50 : vector<1x1x16x128xbf16> to vector<16x128xbf16>
      %c4 = arith.constant 4 : index
      %c0_40 = arith.constant 0 : index
      %c0_41 = arith.constant 0 : index
      %52 = vector.load %arg3[%c4, %c0_40, %c0_41] : memref<9x128x128xbf16, #tpu.memory_space<vmem>>, vector<1x128x128xbf16>
      %53 = vector.shape_cast %52 : vector<1x128x128xbf16> to vector<128x128xbf16>
      %cst_42 = arith.constant dense<0.000000e+00> : vector<16x128xf32>
      %54 = tpu.matmul %51, %53, %cst_42 {dimension_numbers = #tpu.dot_dimension_numbers<[1], [0], [0], [1], [0, 0, 1, 1], [], []>} : vector<16x128xbf16>, vector<128x128xbf16>, vector<16x128xf32> -> vector<16x128xf32>
      %55 = arith.addf %47, %54 : vector<16x128xf32>
      %c1_i32_43 = arith.constant 1 : i32
      %56 = arith.addi %14, %c1_i32_43 : i32
      %c0_44 = arith.constant 0 : index
      %57 = arith.index_cast %56 : i32 to index
      %c2_45 = arith.constant 2 : index
      %c0_46 = arith.constant 0 : index
      %58 = vector.load %arg2[%c0_44, %57, %c2_45, %c0_46] : memref<1x18x18x128xbf16, #tpu.memory_space<vmem>>, vector<1x1x16x128xbf16>
      %59 = vector.shape_cast %58 : vector<1x1x16x128xbf16> to vector<16x128xbf16>
      %c5 = arith.constant 5 : index
      %c0_47 = arith.constant 0 : index
      %c0_48 = arith.constant 0 : index
      %60 = vector.load %arg3[%c5, %c0_47, %c0_48] : memref<9x128x128xbf16, #tpu.memory_space<vmem>>, vector<1x128x128xbf16>
      %61 = vector.shape_cast %60 : vector<1x128x128xbf16> to vector<128x128xbf16>
      %cst_49 = arith.constant dense<0.000000e+00> : vector<16x128xf32>
      %62 = tpu.matmul %59, %61, %cst_49 {dimension_numbers = #tpu.dot_dimension_numbers<[1], [0], [0], [1], [0, 0, 1, 1], [], []>} : vector<16x128xbf16>, vector<128x128xbf16>, vector<16x128xf32> -> vector<16x128xf32>
      %63 = arith.addf %55, %62 : vector<16x128xf32>
      %c2_i32 = arith.constant 2 : i32
      %64 = arith.addi %14, %c2_i32 : i32
      %c0_50 = arith.constant 0 : index
      %65 = arith.index_cast %64 : i32 to index
      %c0_51 = arith.constant 0 : index
      %c0_52 = arith.constant 0 : index
      %66 = vector.load %arg2[%c0_50, %65, %c0_51, %c0_52] : memref<1x18x18x128xbf16, #tpu.memory_space<vmem>>, vector<1x1x16x128xbf16>
      %67 = vector.shape_cast %66 : vector<1x1x16x128xbf16> to vector<16x128xbf16>
      %c6 = arith.constant 6 : index
      %c0_53 = arith.constant 0 : index
      %c0_54 = arith.constant 0 : index
      %68 = vector.load %arg3[%c6, %c0_53, %c0_54] : memref<9x128x128xbf16, #tpu.memory_space<vmem>>, vector<1x128x128xbf16>
      %69 = vector.shape_cast %68 : vector<1x128x128xbf16> to vector<128x128xbf16>
      %cst_55 = arith.constant dense<0.000000e+00> : vector<16x128xf32>
      %70 = tpu.matmul %67, %69, %cst_55 {dimension_numbers = #tpu.dot_dimension_numbers<[1], [0], [0], [1], [0, 0, 1, 1], [], []>} : vector<16x128xbf16>, vector<128x128xbf16>, vector<16x128xf32> -> vector<16x128xf32>
      %71 = arith.addf %63, %70 : vector<16x128xf32>
      %c2_i32_56 = arith.constant 2 : i32
      %72 = arith.addi %14, %c2_i32_56 : i32
      %c0_57 = arith.constant 0 : index
      %73 = arith.index_cast %72 : i32 to index
      %c1_58 = arith.constant 1 : index
      %c0_59 = arith.constant 0 : index
      %74 = vector.load %arg2[%c0_57, %73, %c1_58, %c0_59] : memref<1x18x18x128xbf16, #tpu.memory_space<vmem>>, vector<1x1x16x128xbf16>
      %75 = vector.shape_cast %74 : vector<1x1x16x128xbf16> to vector<16x128xbf16>
      %c7 = arith.constant 7 : index
      %c0_60 = arith.constant 0 : index
      %c0_61 = arith.constant 0 : index
      %76 = vector.load %arg3[%c7, %c0_60, %c0_61] : memref<9x128x128xbf16, #tpu.memory_space<vmem>>, vector<1x128x128xbf16>
      %77 = vector.shape_cast %76 : vector<1x128x128xbf16> to vector<128x128xbf16>
      %cst_62 = arith.constant dense<0.000000e+00> : vector<16x128xf32>
      %78 = tpu.matmul %75, %77, %cst_62 {dimension_numbers = #tpu.dot_dimension_numbers<[1], [0], [0], [1], [0, 0, 1, 1], [], []>} : vector<16x128xbf16>, vector<128x128xbf16>, vector<16x128xf32> -> vector<16x128xf32>
      %79 = arith.addf %71, %78 : vector<16x128xf32>
      %c2_i32_63 = arith.constant 2 : i32
      %80 = arith.addi %14, %c2_i32_63 : i32
      %c0_64 = arith.constant 0 : index
      %81 = arith.index_cast %80 : i32 to index
      %c2_65 = arith.constant 2 : index
      %c0_66 = arith.constant 0 : index
      %82 = vector.load %arg2[%c0_64, %81, %c2_65, %c0_66] : memref<1x18x18x128xbf16, #tpu.memory_space<vmem>>, vector<1x1x16x128xbf16>
      %83 = vector.shape_cast %82 : vector<1x1x16x128xbf16> to vector<16x128xbf16>
      %c8 = arith.constant 8 : index
      %c0_67 = arith.constant 0 : index
      %c0_68 = arith.constant 0 : index
      %84 = vector.load %arg3[%c8, %c0_67, %c0_68] : memref<9x128x128xbf16, #tpu.memory_space<vmem>>, vector<1x128x128xbf16>
      %85 = vector.shape_cast %84 : vector<1x128x128xbf16> to vector<128x128xbf16>
      %cst_69 = arith.constant dense<0.000000e+00> : vector<16x128xf32>
      %86 = tpu.matmul %83, %85, %cst_69 {dimension_numbers = #tpu.dot_dimension_numbers<[1], [0], [0], [1], [0, 0, 1, 1], [], []>} : vector<16x128xbf16>, vector<128x128xbf16>, vector<16x128xf32> -> vector<16x128xf32>
      %87 = arith.addf %79, %86 : vector<16x128xf32>
      %88 = vector.extract_strided_slice %87 {offsets = [0, 0], sizes = [16, 8], strides = [1, 1]} : vector<16x128xf32> to vector<16x8xf32>
      %89 = arith.truncf %88 : vector<16x8xf32> to vector<16x8xbf16>
      %c0_70 = arith.constant 0 : index
      %90 = arith.index_cast %arg7 : i32 to index
      %c0_71 = arith.constant 0 : index
      %c0_72 = arith.constant 0 : index
      %91 = vector.load %arg4[%c0_70, %90, %c0_71, %c0_72] : memref<1x16x16x8xbf16, #tpu.memory_space<vmem>>, vector<1x1x16x8xbf16>
      %92 = vector.shape_cast %91 : vector<1x1x16x8xbf16> to vector<16x8xbf16>
      %93 = vector.shape_cast %89 : vector<16x8xbf16> to vector<1x1x16x8xbf16>
      tpu.vector_store %arg4[%c0_70, %90, %c0_71, %c0_72], %93 {strides = array<i32>} : memref<1x16x16x8xbf16, #tpu.memory_space<vmem>>, vector<1x1x16x8xbf16>,
      %cst_73 = arith.constant dense<0.000000e+00> : vector<8xf32>
      %94 = vector.multi_reduction <add>, %88, %cst_73 [0] : vector<16x8xf32> to vector<8xf32>
      %95 = vector.shape_cast %94 : vector<8xf32> to vector<1x8xf32>
      %96 = arith.addf %arg8, %95 : vector<1x8xf32>
      %97 = arith.mulf %88, %88 : vector<16x8xf32>
      %cst_74 = arith.constant dense<0.000000e+00> : vector<8xf32>
      %98 = vector.multi_reduction <add>, %97, %cst_74 [0] : vector<16x8xf32> to vector<8xf32>
      %99 = vector.shape_cast %98 : vector<8xf32> to vector<1x8xf32>
      %100 = arith.addf %arg9, %99 : vector<1x8xf32>
      scf.yield %96, %100 : vector<1x8xf32>, vector<1x8xf32>
    }
    %7 = vector.shape_cast %6#0 : vector<1x8xf32> to vector<1x8xf32>
    %8 = vector.broadcast %7 : vector<1x8xf32> to vector<8x8xf32>
    %c0 = arith.constant 0 : index
    %c0_2 = arith.constant 0 : index
    %9 = vector.load %arg5[%c0, %c0_2] : memref<8x8xf32, #tpu.memory_space<vmem>>, vector<8x8xf32>
    tpu.vector_store %arg5[%c0, %c0_2], %8 {strides = array<i32>} : memref<8x8xf32, #tpu.memory_space<vmem>>, vector<8x8xf32>,
    %10 = vector.shape_cast %6#1 : vector<1x8xf32> to vector<1x8xf32>
    %11 = vector.broadcast %10 : vector<1x8xf32> to vector<8x8xf32>
    %c0_3 = arith.constant 0 : index
    %c0_4 = arith.constant 0 : index
    %12 = vector.load %arg6[%c0_3, %c0_4] : memref<8x8xf32, #tpu.memory_space<vmem>>, vector<8x8xf32>
    tpu.vector_store %arg6[%c0_3, %c0_4], %11 {strides = array<i32>} : memref<8x8xf32, #tpu.memory_space<vmem>>, vector<8x8xf32>,
    return
  }
  func.func @transform_0(%arg0: i32, %arg1: i32) -> (i32, i32, i32, i32) {
    %c0_i32 = arith.constant 0 : i32
    %c0_i32_0 = arith.constant 0 : i32
    %c0_i32_1 = arith.constant 0 : i32
    %c0_i32_2 = arith.constant 0 : i32
    return %arg0, %c0_i32, %c0_i32_0, %c0_i32_1 : i32, i32, i32, i32
  }
  func.func @transform_1(%arg0: i32, %arg1: i32) -> (i32, i32, i32) {
    %c0_i32 = arith.constant 0 : i32
    %c0_i32_0 = arith.constant 0 : i32
    %c0_i32_1 = arith.constant 0 : i32
    %c0_i32_2 = arith.constant 0 : i32
    return %c0_i32, %c0_i32_0, %c0_i32_1 : i32, i32, i32
  }
  func.func @transform_2(%arg0: i32, %arg1: i32) -> (i32, i32, i32, i32) {
    %c0_i32 = arith.constant 0 : i32
    %c0_i32_0 = arith.constant 0 : i32
    %c0_i32_1 = arith.constant 0 : i32
    return %arg0, %arg1, %c0_i32, %c0_i32_0 : i32, i32, i32, i32
  }
  func.func @transform_3(%arg0: i32, %arg1: i32) -> (i32, i32) {
    %c1_i32 = arith.constant 1 : i32
    %0 = arith.muli %arg0, %c1_i32 : i32
    %1 = arith.addi %0, %arg1 : i32
    %c0_i32 = arith.constant 0 : i32
    %c0_i32_0 = arith.constant 0 : i32
    return %1, %c0_i32 : i32, i32
  }
  func.func @transform_4(%arg0: i32, %arg1: i32) -> (i32, i32) {
    %c1_i32 = arith.constant 1 : i32
    %0 = arith.muli %arg0, %c1_i32 : i32
    %1 = arith.addi %0, %arg1 : i32
    %c0_i32 = arith.constant 0 : i32
    %c0_i32_0 = arith.constant 0 : i32
    return %1, %c0_i32 : i32, i32
  }
}

</mosaic_0001>

<llo_original>
// kernel: tpu_custom_call.1
$region0: #{tpu_custom_call.1}
  #allocation0 [shape = 'u32[]', space=smem, size = 0x4, offset = 0x4, fixed_abs, tag = 'smem constant byte address 0x4 - core index']
  #allocation1 [shape = 'u32[72,128]{1,0:T(1,128)}', space=vmem, size = 0x9000, scoped, tag = 'internal scratch']
  %s0 = inlined_call_operand.vmem [shape: bf16[2,18,18,128], index: 0, kind: input, shape index: {}]
  %s1 = inlined_call_operand.vmem [shape: bf16[9,128,128], index: 1, kind: input, shape index: {}]
  %s2 = inlined_call_operand.vmem [shape: bf16[2,16,16,8], index: 2, kind: output, shape index: {0}]
  %s3 = inlined_call_operand.vmem [shape: f32[16,8], index: 3, kind: output, shape index: {1}]
  %s4 = inlined_call_operand.vmem [shape: f32[16,8], index: 4, kind: output, shape index: {2}]
  %5 = xla_tuple %s2, %s3, %s4
  %s6 = sld [smem:[#allocation0]]
  $region64: #{tpu_custom_call.1} parent=0
    _
  %s8 = ssub.s32 1, %s6
  %s9 = scalar_select 0, %s8, %s6
  loop: start=0, step=1, limit=4
  $region2: #{tpu_custom_call.1} parent=0 // loop_pre_header
    _
  $region3: #{tpu_custom_call.1} parent=0 // loop_header
    %s11 = sphi 0, %s15
    %p12 = scmp.ge.s32.totalorder %s11, 4
    %s18 = sphi 0, %s30
    %s19 = sphi 0, %s26
    %s20 = sphi 0, %s18
    %s21 = sphi 0, %s19
    %s22 = sphi 0, %s20
    %s23 = sphi 0, %s21
    %s33 = sphi 0, %s35
    %s36 = sphi 0, %s33
    %s37 = sphi 0, %s36
    %s53 = sphi 0, %s37
    %s57 = sphi 0, %s57
    %s59 = sphi 0, %s57
    %s60 = sphi 0, %s59
    %s74 = sphi 0, %s60
    %s82 = sphi 0, %s84
    %s85 = sphi 0, %s82
    %s86 = sphi 0, %s85
    %s102 = sphi 0, %s86
    %s110 = sphi 0, %s112
    %s113 = sphi 0, %s110
    %s114 = sphi 0, %s113
    %s130 = sphi 0, %s114
    %s138 = sphi 0, %s140
    %s141 = sphi 0, %s138
    %s142 = sphi 0, %s141
    %s158 = sphi 0, %s142
  $region4: #{tpu_custom_call.1} parent=0 // loop_header_branch
    %14 = sbr.rel (%p12) target = $region8
  $region5: #{tpu_custom_call.1} parent=0 // loop_body
    %s16 = ssub.s32 %s11, 1
    %s17 = ssub.s32 %s11, 2
    %s24 = sadd.s32 1, %s19
    %p25 = scmp.ge.s32.totalorder %s24, 1
    %s26 = scalar_select %p25, 0, %s24
    %s27 = sadd.s32 1, %s18
    %s28 = scalar_select %p25, %s27, %s18
    %p29 = scmp.ge.s32.totalorder %s28, 2
    %s30 = scalar_select %p29, 0, %s28
    %s31 = ssub.s32 %s18, %s30
    %p32 = scmp.eq.s32.totalorder %s31, 0
    %s34 = sadd.s32 %s33, 1
    %s35 = scalar_select %p32, %s33, %s34
    %p38 = pneg %p32
    %p39 = scmp.eq.s32.totalorder %s11, 1
    %p40 = por %p38, %p39
    %p41 = scmp.ne.s32.totalorder %s33, %s36
    %p42 = scmp.eq.s32.totalorder %s11, 0
    %p43 = por %p41, %p42
    %p44 = scmp.ne.s32.totalorder %s33, %s36
    %p45 = scmp.eq.s32.totalorder %s16, 1
    %p46 = por %p44, %p45
    %p47 = scmp.ne.s32.totalorder %s36, %s37
    %p48 = scmp.eq.s32.totalorder %s16, 0
    %p49 = por %p47, %p48
    %p50 = scmp.ne.s32.totalorder %s36, %s37
    %p51 = scmp.eq.s32.totalorder %s17, 1
    %p52 = por %p50, %p51
    %p54 = scmp.ne.s32.totalorder %s37, %s53
    %p55 = scmp.eq.s32.totalorder %s17, 0
    %p56 = por %p54, %p55
    %s58 = sadd.s32 %s57, 1
    %p61 = scmp.eq.s32.totalorder %s11, 1
    %p62 = scmp.ne.s32.totalorder %s57, %s59
    %p63 = scmp.eq.s32.totalorder %s11, 0
    %p64 = por %p62, %p63
    %p65 = scmp.ne.s32.totalorder %s57, %s59
    %p66 = scmp.eq.s32.totalorder %s16, 1
    %p67 = por %p65, %p66
    %p68 = scmp.ne.s32.totalorder %s59, %s60
    %p69 = scmp.eq.s32.totalorder %s16, 0
    %p70 = por %p68, %p69
    %p71 = scmp.ne.s32.totalorder %s59, %s60
    %p72 = scmp.eq.s32.totalorder %s17, 1
    %p73 = por %p71, %p72
    %p75 = scmp.ne.s32.totalorder %s60, %s74
    %p76 = scmp.eq.s32.totalorder %s17, 0
    %p77 = por %p75, %p76
    %s78 = ssub.s32 %s18, %s30
    %s79 = ssub.s32 %s19, %s26
    %s80 = sor.u32 %s78, %s79
    %p81 = scmp.eq.s32.totalorder %s80, 0
    %s83 = sadd.s32 %s82, 1
    %s84 = scalar_select %p81, %s82, %s83
    %p87 = pneg %p81
    %p88 = scmp.eq.s32.totalorder %s11, 1
    %p89 = por %p87, %p88
    %p90 = scmp.ne.s32.totalorder %s82, %s85
    %p91 = scmp.eq.s32.totalorder %s11, 0
    %p92 = por %p90, %p91
    %p93 = scmp.ne.s32.totalorder %s82, %s85
    %p94 = scmp.eq.s32.totalorder %s16, 1
    %p95 = por %p93, %p94
    %p96 = scmp.ne.s32.totalorder %s85, %s86
    %p97 = scmp.eq.s32.totalorder %s16, 0
    %p98 = por %p96, %p97
    %p99 = scmp.ne.s32.totalorder %s85, %s86
    %p100 = scmp.eq.s32.totalorder %s17, 1
    %p101 = por %p99, %p100
    %p103 = scmp.ne.s32.totalorder %s86, %s102
    %p104 = scmp.eq.s32.totalorder %s17, 0
    %p105 = por %p103, %p104
    %s106 = sadd.s32 %s18, %s19
    %s107 = sadd.s32 %s30, %s26
    %s108 = ssub.s32 %s106, %s107
    %p109 = scmp.eq.s32.totalorder %s108, 0
    %s111 = sadd.s32 %s110, 1
    %s112 = scalar_select %p109, %s110, %s111
    %p115 = pneg %p109
    %p116 = scmp.eq.s32.totalorder %s11, 1
    %p117 = por %p115, %p116
    %p118 = scmp.ne.s32.totalorder %s110, %s113
    %p119 = scmp.eq.s32.totalorder %s11, 0
    %p120 = por %p118, %p119
    %p121 = scmp.ne.s32.totalorder %s110, %s113
    %p122 = scmp.eq.s32.totalorder %s16, 1
    %p123 = por %p121, %p122
    %p124 = scmp.ne.s32.totalorder %s113, %s114
    %p125 = scmp.eq.s32.totalorder %s16, 0
    %p126 = por %p124, %p125
    %p127 = scmp.ne.s32.totalorder %s113, %s114
    %p128 = scmp.eq.s32.totalorder %s17, 1
    %p129 = por %p127, %p128
    %p131 = scmp.ne.s32.totalorder %s114, %s130
    %p132 = scmp.eq.s32.totalorder %s17, 0
    %p133 = por %p131, %p132
    %s134 = sadd.s32 %s18, %s19
    %s135 = sadd.s32 %s30, %s26
    %s136 = ssub.s32 %s134, %s135
    %p137 = scmp.eq.s32.totalorder %s136, 0
    %s139 = sadd.s32 %s138, 1
    %s140 = scalar_select %p137, %s138, %s139
    %p143 = pneg %p137
    %p144 = scmp.eq.s32.totalorder %s11, 1
    %p145 = por %p143, %p144
    %p146 = scmp.ne.s32.totalorder %s138, %s141
    %p147 = scmp.eq.s32.totalorder %s11, 0
    %p148 = por %p146, %p147
    %p149 = scmp.ne.s32.totalorder %s138, %s141
    %p150 = scmp.eq.s32.totalorder %s16, 1
    %p151 = por %p149, %p150
    %p152 = scmp.ne.s32.totalorder %s141, %s142
    %p153 = scmp.eq.s32.totalorder %s16, 0
    %p154 = por %p152, %p153
    %p155 = scmp.ne.s32.totalorder %s141, %s142
    %p156 = scmp.eq.s32.totalorder %s17, 1
    %p157 = por %p155, %p156
    %p159 = scmp.ne.s32.totalorder %s142, %s158
    %p160 = scmp.eq.s32.totalorder %s17, 0
    %p161 = por %p159, %p160
    %p162 = scmp.le.s32.totalorder 1, %s11
    %p163 = scmp.lt.s32.totalorder %s11, 3
    %p164 = pnand %p162, %p163
    %p165 = pneg %p164
    // Predicated region
    $region9: #{tpu_custom_call.1} parent=5 // pred_check
      _
    $region10: #{tpu_custom_call.1} parent=5 // pred_check_branch
      %167 = sbr.rel (%p164) target = $region12
    $region11: #{tpu_custom_call.1} parent=5 // pred_region
      %s168 = ssub.s32 %s11, 1
      // Predicated region
      $region13: #{tpu_custom_call.1} parent=11 // pred_check
        %p169 = pneg %p70
      $region14: #{tpu_custom_call.1} parent=11 // pred_check_branch
        %171 = sbr.rel (%p169) target = $region16
      $region15: #{tpu_custom_call.1} parent=11 // pred_region
        _
      $region16: #{tpu_custom_call.1} parent=11 // pred_fallthru
        _
    $region12: #{tpu_custom_call.1} parent=5 // pred_fallthru
      _
    %p172 = scmp.lt.s32.totalorder %s11, 2
    // Predicated region
    $region17: #{tpu_custom_call.1} parent=5 // pred_check
      %p173 = pneg %p172
    $region18: #{tpu_custom_call.1} parent=5 // pred_check_branch
      %175 = sbr.rel (%p173) target = $region20
    $region19: #{tpu_custom_call.1} parent=5 // pred_region
      // Predicated region
      $region21: #{tpu_custom_call.1} parent=19 // pred_check
        %p176 = pneg %p43
      $region22: #{tpu_custom_call.1} parent=19 // pred_check_branch
        %178 = sbr.rel (%p176) target = $region24
      $region23: #{tpu_custom_call.1} parent=19 // pred_region
        %p179 = scmp.lt.s32.totalorder %s18, 1
        %s180 = scalar_select %p179, %s18, 1
        %s181 = smul.addr %s180, 54
        %s182 = smul.addr %s181, 4
        %s183 = scalar_lea.vmem %s0, %s182
      $region24: #{tpu_custom_call.1} parent=19 // pred_fallthru
        _
    $region20: #{tpu_custom_call.1} parent=5 // pred_fallthru
      _
    %p184 = scmp.le.s32.totalorder 1, %s11
    %p185 = scmp.lt.s32.totalorder %s11, 3
    %p186 = pnand %p184, %p185
    %p187 = pneg %p186
    // Predicated region
    $region25: #{tpu_custom_call.1} parent=5 // pred_check
      _
    $region26: #{tpu_custom_call.1} parent=5 // pred_check_branch
      %189 = sbr.rel (%p186) target = $region28
    $region27: #{tpu_custom_call.1} parent=5 // pred_region
      %s190 = ssub.s32 %s11, 1
      %p191 = scmp.lt.s32.totalorder %s20, 1
      %s192 = scalar_select %p191, %s20, 1
      %s193 = smul.addr %s192, 54
      %s194 = smul.addr %s193, 4
      %s195 = scalar_lea.vmem %s0, %s194
      %p196 = pneg %p49
      %p197 = pneg %p46
      %p198 = pneg %p70
      %p199 = pneg %p67
      %p200 = pneg %p98
      %p201 = pneg %p95
      %s202 = smul.u32 16, %s21
      %p203 = scmp.lt.s32.totalorder %s20, 1
      %s204 = scalar_select %p203, %s20, 1
      %p205 = scmp.lt.s32.totalorder %s202, 15
      %s206 = scalar_select %p205, %s202, 15
      %s207 = smul.addr %s206, 2
      %s208 = smul.addr %s204, 32
      %s209 = sadd.s32 %s207, %s208
      %s210 = smul.addr %s209, 4
      %s211 = scalar_lea.vmem %s2, %s210
      %p212 = pneg %p126
      %p213 = pneg %p123
      %s214 = sadd.s32 %s20, %s21
      %p215 = scmp.lt.s32.totalorder %s214, 1
      %s216 = scalar_select %p215, %s214, 1
      %s217 = smul.addr %s216, 8
      %s218 = scalar_lea.vmem %s3, %s217
      %p219 = pneg %p154
      %p220 = pneg %p151
      %s221 = sadd.s32 %s20, %s21
      %p222 = scmp.lt.s32.totalorder %s221, 1
      %s223 = scalar_select %p222, %s221, 1
      %s224 = smul.addr %s223, 8
      %s225 = scalar_lea.vmem %s4, %s224
      %p226 = scmp.lt.s32.totalorder %s20, 1
      %s227 = scalar_select %p226, %s20, 1
      %s228 = smul.addr %s227, 54
      %s229 = smul.addr %s228, 4
      %s230 = scalar_lea.vmem %s0, %s229
      %s231 = smul.u32 16, %s21
      %p232 = scmp.lt.s32.totalorder %s20, 1
      %s233 = scalar_select %p232, %s20, 1
      %p234 = scmp.lt.s32.totalorder %s231, 15
      %s235 = scalar_select %p234, %s231, 15
      %s236 = smul.addr %s235, 2
      %s237 = smul.addr %s233, 32
      %s238 = sadd.s32 %s236, %s237
      %s239 = smul.addr %s238, 4
      %s240 = scalar_lea.vmem %s2, %s239
      %s241 = smul.u32 16, %s21
      %s242 = sadd.s32 %s20, %s21
      %p243 = scmp.lt.s32.totalorder %s242, 1
      %s244 = scalar_select %p243, %s242, 1
      %s245 = smul.addr %s244, 8
      %s246 = scalar_lea.vmem %s3, %s245
      %s247 = sadd.s32 %s20, %s21
      %s248 = sadd.s32 %s20, %s21
      %p249 = scmp.lt.s32.totalorder %s248, 1
      %s250 = scalar_select %p249, %s248, 1
      %s251 = smul.addr %s250, 8
      %s252 = scalar_lea.vmem %s4, %s251
      %s253 = sadd.s32 %s20, %s21
      %s254 = smul.u32 %s21, 16
      %s255 = ssub.s32 16, %s254
      %p256 = scmp.lt.s32.totalorder %s255, 16
      %s257 = scalar_select %p256, %s255, 16
      // While loop
      $region29: #{tpu_custom_call.1} parent=27 // loop_pre_header
        _
      $region30: #{tpu_custom_call.1} parent=27 // loop_header
        %s259 = sphi 0, %s261
        %p260 = scmp.ge.s32.totalorder %s259, %s257
        %v264 = vphi 0.0, %v1135
        %v265 = vphi 0.0, %v1147
      $region31: #{tpu_custom_call.1} parent=27 // loop_header_branch
        %263 = sbr.rel (%p260) target = $region35
      $region32: #{tpu_custom_call.1} parent=27 // loop_body
        %s266 = sadd.s32 %s254, %s259
        %s267 = smul.u32 %s266, 3
        %s268 = smul.addr %s267, 4
        %s269 = scalar_lea.vmem %s230, %s268
        %v270 = vld [vmem:[%s269] sm:$0xf]
        %v271 = vld [vmem:[%s269 + $0x4] sm:$0xf]
        %v272 = vld [vmem:[%s1] sm:$0xf]
        %v273 = vld [vmem:[%s1 + $0x4] sm:$0xf]
        %v274 = vld [vmem:[%s1 + $0x8] sm:$0xf]
        %v275 = vld [vmem:[%s1 + $0xc] sm:$0xf]
        %v276 = vld [vmem:[%s1 + $0x10] sm:$0xf]
        %v277 = vld [vmem:[%s1 + $0x14] sm:$0xf]
        %v278 = vld [vmem:[%s1 + $0x18] sm:$0xf]
        %v279 = vld [vmem:[%s1 + $0x1c] sm:$0xf]
        %v280 = vld [vmem:[%s1 + $0x20] sm:$0xf]
        %v281 = vld [vmem:[%s1 + $0x24] sm:$0xf]
        %v282 = vld [vmem:[%s1 + $0x28] sm:$0xf]
        %v283 = vld [vmem:[%s1 + $0x2c] sm:$0xf]
        %v284 = vld [vmem:[%s1 + $0x30] sm:$0xf]
        %v285 = vld [vmem:[%s1 + $0x34] sm:$0xf]
        %v286 = vld [vmem:[%s1 + $0x38] sm:$0xf]
        %v287 = vld [vmem:[%s1 + $0x3c] sm:$0xf]
        %v288 = vld [vmem:[%s269 + $0x8] sm:$0x1]
        %s289 = scalar_lea.vmem %s1, 64
        %v290 = vld [vmem:[%s289] sm:$0xf]
        %v291 = vld [vmem:[%s289 + $0x4] sm:$0xf]
        %v292 = vld [vmem:[%s289 + $0x8] sm:$0xf]
        %v293 = vld [vmem:[%s289 + $0xc] sm:$0xf]
        %v294 = vld [vmem:[%s289 + $0x10] sm:$0xf]
        %v295 = vld [vmem:[%s289 + $0x14] sm:$0xf]
        %v296 = vld [vmem:[%s289 + $0x18] sm:$0xf]
        %v297 = vld [vmem:[%s289 + $0x1c] sm:$0xf]
        %v298 = vld [vmem:[%s289 + $0x20] sm:$0xf]
        %v299 = vld [vmem:[%s289 + $0x24] sm:$0xf]
        %v300 = vld [vmem:[%s289 + $0x28] sm:$0xf]
        %v301 = vld [vmem:[%s289 + $0x2c] sm:$0xf]
        %v302 = vld [vmem:[%s289 + $0x30] sm:$0xf]
        %v303 = vld [vmem:[%s289 + $0x34] sm:$0xf]
        %v304 = vld [vmem:[%s289 + $0x38] sm:$0xf]
        %v305 = vld [vmem:[%s289 + $0x3c] sm:$0xf]
        %v309 = vunpack.c.l.b16 %v270
        %v310 = vunpack.c.l.b16 %v271
        %v311 = vunpack.c.l.b16 %v288
        %v312 = vpack.c.b16 %v310, %v309
        %v313 = vpack.c.b16 %v311, %v311
        %vm314 = vsmask.f32 7424
        %v316 = vshrl.u32 %v312, 16
        %v318 = vshll.u32 %v312, 16
        %v320 = vrot.slane %v318, 1
        %v321 = vor.u32 %v316, %v320
        %v323 = vshll.u32 %v313, 16
        %v325 = vrot.slane %v323, 1
        %v326 = vsel %vm314, %v321, %v325
        %v344 = vunpack.c.l.b16 %v290
        %v345 = vunpack.c.l.b16 %v291
        %v346 = vunpack.c.l.b16 %v292
        %v347 = vunpack.c.l.b16 %v293
        %v348 = vunpack.c.l.b16 %v294
        %v349 = vunpack.c.l.b16 %v295
        %v350 = vunpack.c.l.b16 %v296
        %v351 = vunpack.c.l.b16 %v297
        %v352 = vunpack.c.l.b16 %v298
        %v353 = vunpack.c.l.b16 %v299
        %v354 = vunpack.c.l.b16 %v300
        %v355 = vunpack.c.l.b16 %v301
        %v356 = vunpack.c.l.b16 %v302
        %v357 = vunpack.c.l.b16 %v303
        %v358 = vunpack.c.l.b16 %v304
        %v359 = vunpack.c.l.b16 %v305
        %v360 = vpack.c.b16 %v345, %v344
        %v361 = vpack.c.b16 %v347, %v346
        %v362 = vpack.c.b16 %v349, %v348
        %v363 = vpack.c.b16 %v351, %v350
        %v364 = vpack.c.b16 %v353, %v352
        %v365 = vpack.c.b16 %v355, %v354
        %v366 = vpack.c.b16 %v357, %v356
        %v367 = vpack.c.b16 %v359, %v358
        %376 = vmatpush.bf16.msra.mxu0 %v367
        %377 = vmatpush.bf16.msra.mxu0 %v366
        %378 = vmatpush.bf16.msra.mxu0 %v365
        %379 = vmatpush.bf16.msra.mxu0 %v364
        %380 = vmatpush.bf16.msra.mxu0 %v363
        %381 = vmatpush.bf16.msra.mxu0 %v362
        %382 = vmatpush.bf16.msra.mxu0 %v361
        %383 = vmatpush.bf16.msra.mxu0 %v360
        %384 = vmatmul.bf16.gmra.mxu0 %v326
        %v385 = vpop.f32.mrf.mxu0
        %v386 = vadd.f32 0.0, %v385
        %v387 = vpop.f32.mrf.mxu0
        %v388 = vadd.f32 0.0, %v387
        %389 = vdwg.mxu0
        %v407 = vunpack.c.l.b16 %v272
        %v408 = vunpack.c.l.b16 %v273
        %v409 = vunpack.c.l.b16 %v274
        %v410 = vunpack.c.l.b16 %v275
        %v411 = vunpack.c.l.b16 %v276
        %v412 = vunpack.c.l.b16 %v277
        %v413 = vunpack.c.l.b16 %v278
        %v414 = vunpack.c.l.b16 %v279
        %v415 = vunpack.c.l.b16 %v280
        %v416 = vunpack.c.l.b16 %v281
        %v417 = vunpack.c.l.b16 %v282
        %v418 = vunpack.c.l.b16 %v283
        %v419 = vunpack.c.l.b16 %v284
        %v420 = vunpack.c.l.b16 %v285
        %v421 = vunpack.c.l.b16 %v286
        %v422 = vunpack.c.l.b16 %v287
        %v423 = vpack.c.b16 %v408, %v407
        %v424 = vpack.c.b16 %v410, %v409
        %v425 = vpack.c.b16 %v412, %v411
        %v426 = vpack.c.b16 %v414, %v413
        %v427 = vpack.c.b16 %v416, %v415
        %v428 = vpack.c.b16 %v418, %v417
        %v429 = vpack.c.b16 %v420, %v419
        %v430 = vpack.c.b16 %v422, %v421
        %439 = vmatpush.bf16.msra.mxu0 %v430
        %440 = vmatpush.bf16.msra.mxu0 %v429
        %441 = vmatpush.bf16.msra.mxu0 %v428
        %442 = vmatpush.bf16.msra.mxu0 %v427
        %443 = vmatpush.bf16.msra.mxu0 %v426
        %444 = vmatpush.bf16.msra.mxu0 %v425
        %445 = vmatpush.bf16.msra.mxu0 %v424
        %446 = vmatpush.bf16.msra.mxu0 %v423
        %447 = vmatmul.bf16.gmra.mxu0 %v312
        %v448 = vpop.f32.mrf.mxu0
        %v449 = vadd.f32 %v386, %v448
        %v450 = vpop.f32.mrf.mxu0
        %v451 = vadd.f32 %v388, %v450
        %452 = vdwg.mxu0
        %v453 = vld [vmem:[%s269] sm:$0xe]
        %s454 = scalar_lea.vmem %s1, 128
        %v455 = vld [vmem:[%s454] sm:$0xf]
        %v456 = vld [vmem:[%s454 + $0x4] sm:$0xf]
        %v457 = vld [vmem:[%s454 + $0x8] sm:$0xf]
        %v458 = vld [vmem:[%s454 + $0xc] sm:$0xf]
        %v459 = vld [vmem:[%s454 + $0x10] sm:$0xf]
        %v460 = vld [vmem:[%s454 + $0x14] sm:$0xf]
        %v461 = vld [vmem:[%s454 + $0x18] sm:$0xf]
        %v462 = vld [vmem:[%s454 + $0x1c] sm:$0xf]
        %v463 = vld [vmem:[%s454 + $0x20] sm:$0xf]
        %v464 = vld [vmem:[%s454 + $0x24] sm:$0xf]
        %v465 = vld [vmem:[%s454 + $0x28] sm:$0xf]
        %v466 = vld [vmem:[%s454 + $0x2c] sm:$0xf]
        %v467 = vld [vmem:[%s454 + $0x30] sm:$0xf]
        %v468 = vld [vmem:[%s454 + $0x34] sm:$0xf]
        %v469 = vld [vmem:[%s454 + $0x38] sm:$0xf]
        %v470 = vld [vmem:[%s454 + $0x3c] sm:$0xf]
        %v472 = vunpack.c.l.b16 %v453
        %v473 = vpack.c.b16 %v310, %v472
        %vm474 = vcmask 1046528
        %v475 = vrot.slane %v473, 1
        %v476 = vrot.slane %v313, 1
        %v477 = vsel %vm474, %v475, %v476
        %v495 = vunpack.c.l.b16 %v455
        %v496 = vunpack.c.l.b16 %v456
        %v497 = vunpack.c.l.b16 %v457
        %v498 = vunpack.c.l.b16 %v458
        %v499 = vunpack.c.l.b16 %v459
        %v500 = vunpack.c.l.b16 %v460
        %v501 = vunpack.c.l.b16 %v461
        %v502 = vunpack.c.l.b16 %v462
        %v503 = vunpack.c.l.b16 %v463
        %v504 = vunpack.c.l.b16 %v464
        %v505 = vunpack.c.l.b16 %v465
        %v506 = vunpack.c.l.b16 %v466
        %v507 = vunpack.c.l.b16 %v467
        %v508 = vunpack.c.l.b16 %v468
        %v509 = vunpack.c.l.b16 %v469
        %v510 = vunpack.c.l.b16 %v470
        %v511 = vpack.c.b16 %v496, %v495
        %v512 = vpack.c.b16 %v498, %v497
        %v513 = vpack.c.b16 %v500, %v499
        %v514 = vpack.c.b16 %v502, %v501
        %v515 = vpack.c.b16 %v504, %v503
        %v516 = vpack.c.b16 %v506, %v505
        %v517 = vpack.c.b16 %v508, %v507
        %v518 = vpack.c.b16 %v510, %v509
        %527 = vmatpush.bf16.msra.mxu0 %v518
        %528 = vmatpush.bf16.msra.mxu0 %v517
        %529 = vmatpush.bf16.msra.mxu0 %v516
        %530 = vmatpush.bf16.msra.mxu0 %v515
        %531 = vmatpush.bf16.msra.mxu0 %v514
        %532 = vmatpush.bf16.msra.mxu0 %v513
        %533 = vmatpush.bf16.msra.mxu0 %v512
        %534 = vmatpush.bf16.msra.mxu0 %v511
        %535 = vmatmul.bf16.gmra.mxu0 %v477
        %v536 = vpop.f32.mrf.mxu0
        %v537 = vadd.f32 0.0, %v536
        %v538 = vpop.f32.mrf.mxu0
        %v539 = vadd.f32 0.0, %v538
        %540 = vdwg.mxu0
        %v541 = vadd.f32 %v449, %v537
        %v542 = vadd.f32 %v451, %v539
        %s543 = sadd.s32 %s266, 1
        %s544 = smul.u32 %s543, 3
        %s545 = smul.addr %s544, 4
        %s546 = scalar_lea.vmem %s230, %s545
        %v547 = vld [vmem:[%s546] sm:$0xf]
        %v548 = vld [vmem:[%s546 + $0x4] sm:$0xf]
        %s549 = scalar_lea.vmem %s1, 192
        %v550 = vld [vmem:[%s549] sm:$0xf]
        %v551 = vld [vmem:[%s549 + $0x4] sm:$0xf]
        %v552 = vld [vmem:[%s549 + $0x8] sm:$0xf]
        %v553 = vld [vmem:[%s549 + $0xc] sm:$0xf]
        %v554 = vld [vmem:[%s549 + $0x10] sm:$0xf]
        %v555 = vld [vmem:[%s549 + $0x14] sm:$0xf]
        %v556 = vld [vmem:[%s549 + $0x18] sm:$0xf]
        %v557 = vld [vmem:[%s549 + $0x1c] sm:$0xf]
        %v558 = vld [vmem:[%s549 + $0x20] sm:$0xf]
        %v559 = vld [vmem:[%s549 + $0x24] sm:$0xf]
        %v560 = vld [vmem:[%s549 + $0x28] sm:$0xf]
        %v561 = vld [vmem:[%s549 + $0x2c] sm:$0xf]
        %v562 = vld [vmem:[%s549 + $0x30] sm:$0xf]
        %v563 = vld [vmem:[%s549 + $0x34] sm:$0xf]
        %v564 = vld [vmem:[%s549 + $0x38] sm:$0xf]
        %v565 = vld [vmem:[%s549 + $0x3c] sm:$0xf]
        %v568 = vunpack.c.l.b16 %v547
        %v569 = vunpack.c.l.b16 %v548
        %v570 = vpack.c.b16 %v569, %v568
        %v588 = vunpack.c.l.b16 %v550
        %v589 = vunpack.c.l.b16 %v551
        %v590 = vunpack.c.l.b16 %v552
        %v591 = vunpack.c.l.b16 %v553
        %v592 = vunpack.c.l.b16 %v554
        %v593 = vunpack.c.l.b16 %v555
        %v594 = vunpack.c.l.b16 %v556
        %v595 = vunpack.c.l.b16 %v557
        %v596 = vunpack.c.l.b16 %v558
        %v597 = vunpack.c.l.b16 %v559
        %v598 = vunpack.c.l.b16 %v560
        %v599 = vunpack.c.l.b16 %v561
        %v600 = vunpack.c.l.b16 %v562
        %v601 = vunpack.c.l.b16 %v563
        %v602 = vunpack.c.l.b16 %v564
        %v603 = vunpack.c.l.b16 %v565
        %v604 = vpack.c.b16 %v589, %v588
        %v605 = vpack.c.b16 %v591, %v590
        %v606 = vpack.c.b16 %v593, %v592
        %v607 = vpack.c.b16 %v595, %v594
        %v608 = vpack.c.b16 %v597, %v596
        %v609 = vpack.c.b16 %v599, %v598
        %v610 = vpack.c.b16 %v601, %v600
        %v611 = vpack.c.b16 %v603, %v602
        %620 = vmatpush.bf16.msra.mxu0 %v611
        %621 = vmatpush.bf16.msra.mxu0 %v610
        %622 = vmatpush.bf16.msra.mxu0 %v609
        %623 = vmatpush.bf16.msra.mxu0 %v608
        %624 = vmatpush.bf16.msra.mxu0 %v607
        %625 = vmatpush.bf16.msra.mxu0 %v606
        %626 = vmatpush.bf16.msra.mxu0 %v605
        %627 = vmatpush.bf16.msra.mxu0 %v604
        %628 = vmatmul.bf16.gmra.mxu0 %v570
        %v629 = vpop.f32.mrf.mxu0
        %v630 = vadd.f32 0.0, %v629
        %v631 = vpop.f32.mrf.mxu0
        %v632 = vadd.f32 0.0, %v631
        %633 = vdwg.mxu0
        %v634 = vadd.f32 %v541, %v630
        %v635 = vadd.f32 %v542, %v632
        %v636 = vld [vmem:[%s546] sm:$0xf]
        %v637 = vld [vmem:[%s546 + $0x4] sm:$0xf]
        %v638 = vld [vmem:[%s546 + $0x8] sm:$0x1]
        %s639 = scalar_lea.vmem %s1, 256
        %v640 = vld [vmem:[%s639] sm:$0xf]
        %v641 = vld [vmem:[%s639 + $0x4] sm:$0xf]
        %v642 = vld [vmem:[%s639 + $0x8] sm:$0xf]
        %v643 = vld [vmem:[%s639 + $0xc] sm:$0xf]
        %v644 = vld [vmem:[%s639 + $0x10] sm:$0xf]
        %v645 = vld [vmem:[%s639 + $0x14] sm:$0xf]
        %v646 = vld [vmem:[%s639 + $0x18] sm:$0xf]
        %v647 = vld [vmem:[%s639 + $0x1c] sm:$0xf]
        %v648 = vld [vmem:[%s639 + $0x20] sm:$0xf]
        %v649 = vld [vmem:[%s639 + $0x24] sm:$0xf]
        %v650 = vld [vmem:[%s639 + $0x28] sm:$0xf]
        %v651 = vld [vmem:[%s639 + $0x2c] sm:$0xf]
        %v652 = vld [vmem:[%s639 + $0x30] sm:$0xf]
        %v653 = vld [vmem:[%s639 + $0x34] sm:$0xf]
        %v654 = vld [vmem:[%s639 + $0x38] sm:$0xf]
        %v655 = vld [vmem:[%s639 + $0x3c] sm:$0xf]
        %v659 = vunpack.c.l.b16 %v636
        %v660 = vunpack.c.l.b16 %v637
        %v661 = vunpack.c.l.b16 %v638
        %v662 = vpack.c.b16 %v660, %v659
        %v663 = vpack.c.b16 %v661, %v661
        %v665 = vshrl.u32 %v662, 16
        %v667 = vshll.u32 %v662, 16
        %v669 = vrot.slane %v667, 1
        %v670 = vor.u32 %v665, %v669
        %v672 = vshll.u32 %v663, 16
        %v674 = vrot.slane %v672, 1
        %v675 = vsel %vm314, %v670, %v674
        %v693 = vunpack.c.l.b16 %v640
        %v694 = vunpack.c.l.b16 %v641
        %v695 = vunpack.c.l.b16 %v642
        %v696 = vunpack.c.l.b16 %v643
        %v697 = vunpack.c.l.b16 %v644
        %v698 = vunpack.c.l.b16 %v645
        %v699 = vunpack.c.l.b16 %v646
        %v700 = vunpack.c.l.b16 %v647
        %v701 = vunpack.c.l.b16 %v648
        %v702 = vunpack.c.l.b16 %v649
        %v703 = vunpack.c.l.b16 %v650
        %v704 = vunpack.c.l.b16 %v651
        %v705 = vunpack.c.l.b16 %v652
        %v706 = vunpack.c.l.b16 %v653
        %v707 = vunpack.c.l.b16 %v654
        %v708 = vunpack.c.l.b16 %v655
        %v709 = vpack.c.b16 %v694, %v693
        %v710 = vpack.c.b16 %v696, %v695
        %v711 = vpack.c.b16 %v698, %v697
        %v712 = vpack.c.b16 %v700, %v699
        %v713 = vpack.c.b16 %v702, %v701
        %v714 = vpack.c.b16 %v704, %v703
        %v715 = vpack.c.b16 %v706, %v705
        %v716 = vpack.c.b16 %v708, %v707
        %725 = vmatpush.bf16.msra.mxu0 %v716
        %726 = vmatpush.bf16.msra.mxu0 %v715
        %727 = vmatpush.bf16.msra.mxu0 %v714
        %728 = vmatpush.bf16.msra.mxu0 %v713
        %729 = vmatpush.bf16.msra.mxu0 %v712
        %730 = vmatpush.bf16.msra.mxu0 %v711
        %731 = vmatpush.bf16.msra.mxu0 %v710
        %732 = vmatpush.bf16.msra.mxu0 %v709
        %733 = vmatmul.bf16.gmra.mxu0 %v675
        %v734 = vpop.f32.mrf.mxu0
        %v735 = vadd.f32 0.0, %v734
        %v736 = vpop.f32.mrf.mxu0
        %v737 = vadd.f32 0.0, %v736
        %738 = vdwg.mxu0
        %v739 = vadd.f32 %v634, %v735
        %v740 = vadd.f32 %v635, %v737
        %v741 = vld [vmem:[%s546] sm:$0xe]
        %s742 = scalar_lea.vmem %s1, 320
        %v743 = vld [vmem:[%s742] sm:$0xf]
        %v744 = vld [vmem:[%s742 + $0x4] sm:$0xf]
        %v745 = vld [vmem:[%s742 + $0x8] sm:$0xf]
        %v746 = vld [vmem:[%s742 + $0xc] sm:$0xf]
        %v747 = vld [vmem:[%s742 + $0x10] sm:$0xf]
        %v748 = vld [vmem:[%s742 + $0x14] sm:$0xf]
        %v749 = vld [vmem:[%s742 + $0x18] sm:$0xf]
        %v750 = vld [vmem:[%s742 + $0x1c] sm:$0xf]
        %v751 = vld [vmem:[%s742 + $0x20] sm:$0xf]
        %v752 = vld [vmem:[%s742 + $0x24] sm:$0xf]
        %v753 = vld [vmem:[%s742 + $0x28] sm:$0xf]
        %v754 = vld [vmem:[%s742 + $0x2c] sm:$0xf]
        %v755 = vld [vmem:[%s742 + $0x30] sm:$0xf]
        %v756 = vld [vmem:[%s742 + $0x34] sm:$0xf]
        %v757 = vld [vmem:[%s742 + $0x38] sm:$0xf]
        %v758 = vld [vmem:[%s742 + $0x3c] sm:$0xf]
        %v760 = vunpack.c.l.b16 %v741
        %v761 = vpack.c.b16 %v660, %v760
        %v762 = vrot.slane %v761, 1
        %v763 = vrot.slane %v663, 1
        %v764 = vsel %vm474, %v762, %v763
        %v782 = vunpack.c.l.b16 %v743
        %v783 = vunpack.c.l.b16 %v744
        %v784 = vunpack.c.l.b16 %v745
        %v785 = vunpack.c.l.b16 %v746
        %v786 = vunpack.c.l.b16 %v747
        %v787 = vunpack.c.l.b16 %v748
        %v788 = vunpack.c.l.b16 %v749
        %v789 = vunpack.c.l.b16 %v750
        %v790 = vunpack.c.l.b16 %v751
        %v791 = vunpack.c.l.b16 %v752
        %v792 = vunpack.c.l.b16 %v753
        %v793 = vunpack.c.l.b16 %v754
        %v794 = vunpack.c.l.b16 %v755
        %v795 = vunpack.c.l.b16 %v756
        %v796 = vunpack.c.l.b16 %v757
        %v797 = vunpack.c.l.b16 %v758
        %v798 = vpack.c.b16 %v783, %v782
        %v799 = vpack.c.b16 %v785, %v784
        %v800 = vpack.c.b16 %v787, %v786
        %v801 = vpack.c.b16 %v789, %v788
        %v802 = vpack.c.b16 %v791, %v790
        %v803 = vpack.c.b16 %v793, %v792
        %v804 = vpack.c.b16 %v795, %v794
        %v805 = vpack.c.b16 %v797, %v796
        %814 = vmatpush.bf16.msra.mxu0 %v805
        %815 = vmatpush.bf16.msra.mxu0 %v804
        %816 = vmatpush.bf16.msra.mxu0 %v803
        %817 = vmatpush.bf16.msra.mxu0 %v802
        %818 = vmatpush.bf16.msra.mxu0 %v801
        %819 = vmatpush.bf16.msra.mxu0 %v800
        %820 = vmatpush.bf16.msra.mxu0 %v799
        %821 = vmatpush.bf16.msra.mxu0 %v798
        %822 = vmatmul.bf16.gmra.mxu0 %v764
        %v823 = vpop.f32.mrf.mxu0
        %v824 = vadd.f32 0.0, %v823
        %v825 = vpop.f32.mrf.mxu0
        %v826 = vadd.f32 0.0, %v825
        %827 = vdwg.mxu0
        %v828 = vadd.f32 %v739, %v824
        %v829 = vadd.f32 %v740, %v826
        %s830 = sadd.s32 %s266, 2
        %s831 = smul.u32 %s830, 3
        %s832 = smul.addr %s831, 4
        %s833 = scalar_lea.vmem %s230, %s832
        %v834 = vld [vmem:[%s833] sm:$0xf]
        %v835 = vld [vmem:[%s833 + $0x4] sm:$0xf]
        %s836 = scalar_lea.vmem %s1, 384
        %v837 = vld [vmem:[%s836] sm:$0xf]
        %v838 = vld [vmem:[%s836 + $0x4] sm:$0xf]
        %v839 = vld [vmem:[%s836 + $0x8] sm:$0xf]
        %v840 = vld [vmem:[%s836 + $0xc] sm:$0xf]
        %v841 = vld [vmem:[%s836 + $0x10] sm:$0xf]
        %v842 = vld [vmem:[%s836 + $0x14] sm:$0xf]
        %v843 = vld [vmem:[%s836 + $0x18] sm:$0xf]
        %v844 = vld [vmem:[%s836 + $0x1c] sm:$0xf]
        %v845 = vld [vmem:[%s836 + $0x20] sm:$0xf]
        %v846 = vld [vmem:[%s836 + $0x24] sm:$0xf]
        %v847 = vld [vmem:[%s836 + $0x28] sm:$0xf]
        %v848 = vld [vmem:[%s836 + $0x2c] sm:$0xf]
        %v849 = vld [vmem:[%s836 + $0x30] sm:$0xf]
        %v850 = vld [vmem:[%s836 + $0x34] sm:$0xf]
        %v851 = vld [vmem:[%s836 + $0x38] sm:$0xf]
        %v852 = vld [vmem:[%s836 + $0x3c] sm:$0xf]
        %v855 = vunpack.c.l.b16 %v834
        %v856 = vunpack.c.l.b16 %v835
        %v857 = vpack.c.b16 %v856, %v855
        %v875 = vunpack.c.l.b16 %v837
        %v876 = vunpack.c.l.b16 %v838
        %v877 = vunpack.c.l.b16 %v839
        %v878 = vunpack.c.l.b16 %v840
        %v879 = vunpack.c.l.b16 %v841
        %v880 = vunpack.c.l.b16 %v842
        %v881 = vunpack.c.l.b16 %v843
        %v882 = vunpack.c.l.b16 %v844
        %v883 = vunpack.c.l.b16 %v845
        %v884 = vunpack.c.l.b16 %v846
        %v885 = vunpack.c.l.b16 %v847
        %v886 = vunpack.c.l.b16 %v848
        %v887 = vunpack.c.l.b16 %v849
        %v888 = vunpack.c.l.b16 %v850
        %v889 = vunpack.c.l.b16 %v851
        %v890 = vunpack.c.l.b16 %v852
        %v891 = vpack.c.b16 %v876, %v875
        %v892 = vpack.c.b16 %v878, %v877
        %v893 = vpack.c.b16 %v880, %v879
        %v894 = vpack.c.b16 %v882, %v881
        %v895 = vpack.c.b16 %v884, %v883
        %v896 = vpack.c.b16 %v886, %v885
        %v897 = vpack.c.b16 %v888, %v887
        %v898 = vpack.c.b16 %v890, %v889
        %907 = vmatpush.bf16.msra.mxu0 %v898
        %908 = vmatpush.bf16.msra.mxu0 %v897
        %909 = vmatpush.bf16.msra.mxu0 %v896
        %910 = vmatpush.bf16.msra.mxu0 %v895
        %911 = vmatpush.bf16.msra.mxu0 %v894
        %912 = vmatpush.bf16.msra.mxu0 %v893
        %913 = vmatpush.bf16.msra.mxu0 %v892
        %914 = vmatpush.bf16.msra.mxu0 %v891
        %915 = vmatmul.bf16.gmra.mxu0 %v857
        %v916 = vpop.f32.mrf.mxu0
        %v917 = vadd.f32 0.0, %v916
        %v918 = vpop.f32.mrf.mxu0
        %v919 = vadd.f32 0.0, %v918
        %920 = vdwg.mxu0
        %v921 = vadd.f32 %v828, %v917
        %v922 = vadd.f32 %v829, %v919
        %v923 = vld [vmem:[%s833] sm:$0xf]
        %v924 = vld [vmem:[%s833 + $0x4] sm:$0xf]
        %v925 = vld [vmem:[%s833 + $0x8] sm:$0x1]
        %s926 = scalar_lea.vmem %s1, 448
        %v927 = vld [vmem:[%s926] sm:$0xf]
        %v928 = vld [vmem:[%s926 + $0x4] sm:$0xf]
        %v929 = vld [vmem:[%s926 + $0x8] sm:$0xf]
        %v930 = vld [vmem:[%s926 + $0xc] sm:$0xf]
        %v931 = vld [vmem:[%s926 + $0x10] sm:$0xf]
        %v932 = vld [vmem:[%s926 + $0x14] sm:$0xf]
        %v933 = vld [vmem:[%s926 + $0x18] sm:$0xf]
        %v934 = vld [vmem:[%s926 + $0x1c] sm:$0xf]
        %v935 = vld [vmem:[%s926 + $0x20] sm:$0xf]
        %v936 = vld [vmem:[%s926 + $0x24] sm:$0xf]
        %v937 = vld [vmem:[%s926 + $0x28] sm:$0xf]
        %v938 = vld [vmem:[%s926 + $0x2c] sm:$0xf]
        %v939 = vld [vmem:[%s926 + $0x30] sm:$0xf]
        %v940 = vld [vmem:[%s926 + $0x34] sm:$0xf]
        %v941 = vld [vmem:[%s926 + $0x38] sm:$0xf]
        %v942 = vld [vmem:[%s926 + $0x3c] sm:$0xf]
        %v946 = vunpack.c.l.b16 %v923
        %v947 = vunpack.c.l.b16 %v924
        %v948 = vunpack.c.l.b16 %v925
        %v949 = vpack.c.b16 %v947, %v946
        %v950 = vpack.c.b16 %v948, %v948
        %v952 = vshrl.u32 %v949, 16
        %v954 = vshll.u32 %v949, 16
        %v956 = vrot.slane %v954, 1
        %v957 = vor.u32 %v952, %v956
        %v959 = vshll.u32 %v950, 16
        %v961 = vrot.slane %v959, 1
        %v962 = vsel %vm314, %v957, %v961
        %v980 = vunpack.c.l.b16 %v927
        %v981 = vunpack.c.l.b16 %v928
        %v982 = vunpack.c.l.b16 %v929
        %v983 = vunpack.c.l.b16 %v930
        %v984 = vunpack.c.l.b16 %v931
        %v985 = vunpack.c.l.b16 %v932
        %v986 = vunpack.c.l.b16 %v933
        %v987 = vunpack.c.l.b16 %v934
        %v988 = vunpack.c.l.b16 %v935
        %v989 = vunpack.c.l.b16 %v936
        %v990 = vunpack.c.l.b16 %v937
        %v991 = vunpack.c.l.b16 %v938
        %v992 = vunpack.c.l.b16 %v939
        %v993 = vunpack.c.l.b16 %v940
        %v994 = vunpack.c.l.b16 %v941
        %v995 = vunpack.c.l.b16 %v942
        %v996 = vpack.c.b16 %v981, %v980
        %v997 = vpack.c.b16 %v983, %v982
        %v998 = vpack.c.b16 %v985, %v984
        %v999 = vpack.c.b16 %v987, %v986
        %v1000 = vpack.c.b16 %v989, %v988
        %v1001 = vpack.c.b16 %v991, %v990
        %v1002 = vpack.c.b16 %v993, %v992
        %v1003 = vpack.c.b16 %v995, %v994
        %1012 = vmatpush.bf16.msra.mxu0 %v1003
        %1013 = vmatpush.bf16.msra.mxu0 %v1002
        %1014 = vmatpush.bf16.msra.mxu0 %v1001
        %1015 = vmatpush.bf16.msra.mxu0 %v1000
        %1016 = vmatpush.bf16.msra.mxu0 %v999
        %1017 = vmatpush.bf16.msra.mxu0 %v998
        %1018 = vmatpush.bf16.msra.mxu0 %v997
        %1019 = vmatpush.bf16.msra.mxu0 %v996
        %1020 = vmatmul.bf16.gmra.mxu0 %v962
        %v1021 = vpop.f32.mrf.mxu0
        %v1022 = vadd.f32 0.0, %v1021
        %v1023 = vpop.f32.mrf.mxu0
        %v1024 = vadd.f32 0.0, %v1023
        %1025 = vdwg.mxu0
        %v1026 = vadd.f32 %v921, %v1022
        %v1027 = vadd.f32 %v922, %v1024
        %v1028 = vld [vmem:[%s833] sm:$0xe]
        %s1029 = scalar_lea.vmem %s1, 512
        %v1030 = vld [vmem:[%s1029] sm:$0xf]
        %v1031 = vld [vmem:[%s1029 + $0x4] sm:$0xf]
        %v1032 = vld [vmem:[%s1029 + $0x8] sm:$0xf]
        %v1033 = vld [vmem:[%s1029 + $0xc] sm:$0xf]
        %v1034 = vld [vmem:[%s1029 + $0x10] sm:$0xf]
        %v1035 = vld [vmem:[%s1029 + $0x14] sm:$0xf]
        %v1036 = vld [vmem:[%s1029 + $0x18] sm:$0xf]
        %v1037 = vld [vmem:[%s1029 + $0x1c] sm:$0xf]
        %v1038 = vld [vmem:[%s1029 + $0x20] sm:$0xf]
        %v1039 = vld [vmem:[%s1029 + $0x24] sm:$0xf]
        %v1040 = vld [vmem:[%s1029 + $0x28] sm:$0xf]
        %v1041 = vld [vmem:[%s1029 + $0x2c] sm:$0xf]
        %v1042 = vld [vmem:[%s1029 + $0x30] sm:$0xf]
        %v1043 = vld [vmem:[%s1029 + $0x34] sm:$0xf]
        %v1044 = vld [vmem:[%s1029 + $0x38] sm:$0xf]
        %v1045 = vld [vmem:[%s1029 + $0x3c] sm:$0xf]
        %v1047 = vunpack.c.l.b16 %v1028
        %v1048 = vpack.c.b16 %v947, %v1047
        %v1049 = vrot.slane %v1048, 1
        %v1050 = vrot.slane %v950, 1
        %v1051 = vsel %vm474, %v1049, %v1050
        %v1069 = vunpack.c.l.b16 %v1030
        %v1070 = vunpack.c.l.b16 %v1031
        %v1071 = vunpack.c.l.b16 %v1032
        %v1072 = vunpack.c.l.b16 %v1033
        %v1073 = vunpack.c.l.b16 %v1034
        %v1074 = vunpack.c.l.b16 %v1035
        %v1075 = vunpack.c.l.b16 %v1036
        %v1076 = vunpack.c.l.b16 %v1037
        %v1077 = vunpack.c.l.b16 %v1038
        %v1078 = vunpack.c.l.b16 %v1039
        %v1079 = vunpack.c.l.b16 %v1040
        %v1080 = vunpack.c.l.b16 %v1041
        %v1081 = vunpack.c.l.b16 %v1042
        %v1082 = vunpack.c.l.b16 %v1043
        %v1083 = vunpack.c.l.b16 %v1044
        %v1084 = vunpack.c.l.b16 %v1045
        %v1085 = vpack.c.b16 %v1070, %v1069
        %v1086 = vpack.c.b16 %v1072, %v1071
        %v1087 = vpack.c.b16 %v1074, %v1073
        %v1088 = vpack.c.b16 %v1076, %v1075
        %v1089 = vpack.c.b16 %v1078, %v1077
        %v1090 = vpack.c.b16 %v1080, %v1079
        %v1091 = vpack.c.b16 %v1082, %v1081
        %v1092 = vpack.c.b16 %v1084, %v1083
        %1101 = vmatpush.bf16.msra.mxu0 %v1092
        %1102 = vmatpush.bf16.msra.mxu0 %v1091
        %1103 = vmatpush.bf16.msra.mxu0 %v1090
        %1104 = vmatpush.bf16.msra.mxu0 %v1089
        %1105 = vmatpush.bf16.msra.mxu0 %v1088
        %1106 = vmatpush.bf16.msra.mxu0 %v1087
        %1107 = vmatpush.bf16.msra.mxu0 %v1086
        %1108 = vmatpush.bf16.msra.mxu0 %v1085
        %1109 = vmatmul.bf16.gmra.mxu0 %v1051
        %v1110 = vpop.f32.mrf.mxu0
        %v1111 = vadd.f32 0.0, %v1110
        %v1112 = vpop.f32.mrf.mxu0
        %v1113 = vadd.f32 0.0, %v1112
        %1114 = vdwg.mxu0
        %v1115 = vadd.f32 %v1026, %v1111
        %v1116 = vadd.f32 %v1027, %v1113
        %v1117 = vpack.c.bf16 %v1115, %v1115
        %v1118 = vpack.c.bf16 %v1116, %v1116
        %s1119 = smul.u32 %s259, 2
        %s1120 = smul.addr %s1119, 4
        %s1121 = scalar_lea.vmem %s240, %s1120
        %vm1122 = vcmask 60416
        %1123 = vst.msk [vmem:[%s1121] sm:$0xf] %vm1122, %v1117
        %1124 = vst.msk [vmem:[%s1121 + $0x4] sm:$0xf] %vm1122, %v1118
        %vm1125 = vcmask 64512
        %v1126 = vsel %vm1125, %v1115, 0.0
        %v1127 = vsel %vm1125, %v1116, 0.0
        %v1128 = vadd.f32 %v1126, %v1127
        %v1129 = vrot.slane %v1128, 4
        %v1130 = vadd.f32 %v1128, %v1129
        %v1131 = vrot.slane %v1130, 2
        %v1132 = vadd.f32 %v1130, %v1131
        %v1133 = vrot.slane %v1132, 1
        %v1134 = vadd.f32 %v1132, %v1133
        %v1135 = vadd.f32 %v264, %v1134
        %v1136 = vmul.f32 %v1115, %v1115
        %v1137 = vmul.f32 %v1116, %v1116
        %v1138 = vsel %vm1125, %v1136, 0.0
        %v1139 = vsel %vm1125, %v1137, 0.0
        %v1140 = vadd.f32 %v1138, %v1139
        %v1141 = vrot.slane %v1140, 4
        %v1142 = vadd.f32 %v1140, %v1141
        %v1143 = vrot.slane %v1142, 2
        %v1144 = vadd.f32 %v1142, %v1143
        %v1145 = vrot.slane %v1144, 1
        %v1146 = vadd.f32 %v1144, %v1145
        %v1147 = vadd.f32 %v265, %v1146
      $region33: #{tpu_custom_call.1} parent=27 // loop_footer
        %s261 = sadd.s32 %s259, 1
      $region34: #{tpu_custom_call.1} parent=27 // loop_footer_branch
        %258 = sbr.rel target = $region30
      $region35: #{tpu_custom_call.1} parent=27 // loop_exit
        _
      %vm1148 = vcmask 64512
      %1149 = vst.msk [vmem:[%s246] sm:$0xff] %vm1148, %v264
      %1150 = vst.msk [vmem:[%s252] sm:$0xff] %vm1148, %v265
      %s1151 = smul.u32 16, %s21
      %p1152 = scmp.lt.s32.totalorder %s20, 1
      %s1153 = scalar_select %p1152, %s20, 1
      %p1154 = scmp.lt.s32.totalorder %s1151, 15
      %s1155 = scalar_select %p1154, %s1151, 15
      %s1156 = smul.addr %s1155, 2
      %s1157 = smul.addr %s1153, 32
      %s1158 = sadd.s32 %s1156, %s1157
      %s1159 = smul.addr %s1158, 4
      %s1160 = scalar_lea.vmem %s2, %s1159
      %s1161 = sadd.s32 %s20, %s21
      %p1162 = scmp.lt.s32.totalorder %s1161, 1
      %s1163 = scalar_select %p1162, %s1161, 1
      %s1164 = smul.addr %s1163, 8
      %s1165 = scalar_lea.vmem %s3, %s1164
      %s1166 = sadd.s32 %s20, %s21
      %p1167 = scmp.lt.s32.totalorder %s1166, 1
      %s1168 = scalar_select %p1167, %s1166, 1
      %s1169 = smul.addr %s1168, 8
      %s1170 = scalar_lea.vmem %s4, %s1169
      // Predicated region
      $region36: #{tpu_custom_call.1} parent=27 // pred_check
        %p1171 = pneg %p95
      $region37: #{tpu_custom_call.1} parent=27 // pred_check_branch
        %1173 = sbr.rel (%p1171) target = $region39
      $region38: #{tpu_custom_call.1} parent=27 // pred_region
        %s1174 = smul.u32 16, %s21
      $region39: #{tpu_custom_call.1} parent=27 // pred_fallthru
        _
      // Predicated region
      $region40: #{tpu_custom_call.1} parent=27 // pred_check
        %p1175 = pneg %p123
      $region41: #{tpu_custom_call.1} parent=27 // pred_check_branch
        %1177 = sbr.rel (%p1175) target = $region43
      $region42: #{tpu_custom_call.1} parent=27 // pred_region
        %s1178 = sadd.s32 %s20, %s21
      $region43: #{tpu_custom_call.1} parent=27 // pred_fallthru
        _
      // Predicated region
      $region44: #{tpu_custom_call.1} parent=27 // pred_check
        %p1179 = pneg %p151
      $region45: #{tpu_custom_call.1} parent=27 // pred_check_branch
        %1181 = sbr.rel (%p1179) target = $region47
      $region46: #{tpu_custom_call.1} parent=27 // pred_region
        %s1182 = sadd.s32 %s20, %s21
      $region47: #{tpu_custom_call.1} parent=27 // pred_fallthru
        _
    $region28: #{tpu_custom_call.1} parent=5 // pred_fallthru
      _
    %p1183 = scmp.le.s32.totalorder 2, %s11
    // Predicated region
    $region48: #{tpu_custom_call.1} parent=5 // pred_check
      %p1184 = pneg %p1183
    $region49: #{tpu_custom_call.1} parent=5 // pred_check_branch
      %1186 = sbr.rel (%p1184) target = $region51
    $region50: #{tpu_custom_call.1} parent=5 // pred_region
      %s1187 = ssub.s32 %s11, 2
      // Predicated region
      $region52: #{tpu_custom_call.1} parent=50 // pred_check
        %p1188 = pneg %p101
      $region53: #{tpu_custom_call.1} parent=50 // pred_check_branch
        %1190 = sbr.rel (%p1188) target = $region55
      $region54: #{tpu_custom_call.1} parent=50 // pred_region
        %s1191 = smul.u32 16, %s23
        %p1192 = scmp.lt.s32.totalorder %s22, 1
        %s1193 = scalar_select %p1192, %s22, 1
        %p1194 = scmp.lt.s32.totalorder %s1191, 15
        %s1195 = scalar_select %p1194, %s1191, 15
        %s1196 = smul.addr %s1195, 2
        %s1197 = smul.addr %s1193, 32
        %s1198 = sadd.s32 %s1196, %s1197
        %s1199 = smul.addr %s1198, 4
        %s1200 = scalar_lea.vmem %s2, %s1199
      $region55: #{tpu_custom_call.1} parent=50 // pred_fallthru
        _
      // Predicated region
      $region56: #{tpu_custom_call.1} parent=50 // pred_check
        %p1201 = pneg %p129
      $region57: #{tpu_custom_call.1} parent=50 // pred_check_branch
        %1203 = sbr.rel (%p1201) target = $region59
      $region58: #{tpu_custom_call.1} parent=50 // pred_region
        %s1204 = sadd.s32 %s22, %s23
        %p1205 = scmp.lt.s32.totalorder %s1204, 1
        %s1206 = scalar_select %p1205, %s1204, 1
        %s1207 = smul.addr %s1206, 8
        %s1208 = scalar_lea.vmem %s3, %s1207
      $region59: #{tpu_custom_call.1} parent=50 // pred_fallthru
        _
      // Predicated region
      $region60: #{tpu_custom_call.1} parent=50 // pred_check
        %p1209 = pneg %p157
      $region61: #{tpu_custom_call.1} parent=50 // pred_check_branch
        %1211 = sbr.rel (%p1209) target = $region63
      $region62: #{tpu_custom_call.1} parent=50 // pred_region
        %s1212 = sadd.s32 %s22, %s23
        %p1213 = scmp.lt.s32.totalorder %s1212, 1
        %s1214 = scalar_select %p1213, %s1212, 1
        %s1215 = smul.addr %s1214, 8
        %s1216 = scalar_lea.vmem %s4, %s1215
      $region63: #{tpu_custom_call.1} parent=50 // pred_fallthru
        _
    $region51: #{tpu_custom_call.1} parent=5 // pred_fallthru
      _
  $region6: #{tpu_custom_call.1} parent=0 // loop_footer
    %s15 = sadd.s32 1, %s11
  $region7: #{tpu_custom_call.1} parent=0 // loop_footer_branch
    %10 = sbr.rel target = $region3
  $region8: #{tpu_custom_call.1} parent=0 // loop_exit
    _

// kernel: tpu_custom_call.1
$region0: #{tpu_custom_call.1}
  #allocation0 [shape = 'u32[]', space=smem, size = 0x4, offset = 0x4, fixed_abs, tag = 'smem constant byte address 0x4 - core index']
  #allocation1 [shape = 'u32[72,128]{1,0:T(1,128)}', space=vmem, size = 0x9000, scoped, tag = 'internal scratch']
  %s0 = inlined_call_operand.vmem [shape: bf16[2,18,18,128], index: 0, kind: input, shape index: {}]
  %s1 = inlined_call_operand.vmem [shape: bf16[9,128,128], index: 1, kind: input, shape index: {}]
  %s2 = inlined_call_operand.vmem [shape: bf16[2,16,16,8], index: 2, kind: output, shape index: {0}]
  %s3 = inlined_call_operand.vmem [shape: f32[16,8], index: 3, kind: output, shape index: {1}]
  %s4 = inlined_call_operand.vmem [shape: f32[16,8], index: 4, kind: output, shape index: {2}]
  %5 = xla_tuple %s2, %s3, %s4
  %s6 = sld [smem:[#allocation0]]
  $region64: #{tpu_custom_call.1} parent=0
    _
  %s8 = ssub.s32 1, %s6
  %s9 = scalar_select 0, %s8, %s6
  loop: start=0, step=1, limit=4
  $region2: #{tpu_custom_call.1} parent=0 // loop_pre_header
    _
  $region3: #{tpu_custom_call.1} parent=0 // loop_header
    %s11 = sphi 0, %s15
    %p12 = scmp.ge.s32.totalorder %s11, 4
    %s18 = sphi 0, %s30
    %s19 = sphi 0, %s26
    %s20 = sphi 0, %s18
    %s21 = sphi 0, %s19
    %s22 = sphi 0, %s20
    %s23 = sphi 0, %s21
    %s33 = sphi 0, %s35
    %s36 = sphi 0, %s33
    %s37 = sphi 0, %s36
    %s53 = sphi 0, %s37
    %s57 = sphi 0, %s57
    %s59 = sphi 0, %s57
    %s60 = sphi 0, %s59
    %s74 = sphi 0, %s60
    %s82 = sphi 0, %s84
    %s85 = sphi 0, %s82
    %s86 = sphi 0, %s85
    %s102 = sphi 0, %s86
    %s110 = sphi 0, %s112
    %s113 = sphi 0, %s110
    %s114 = sphi 0, %s113
    %s130 = sphi 0, %s114
    %s138 = sphi 0, %s140
    %s141 = sphi 0, %s138
    %s142 = sphi 0, %s141
    %s158 = sphi 0, %s142
  $region4: #{tpu_custom_call.1} parent=0 // loop_header_branch
    %14 = sbr.rel (%p12) target = $region8
  $region5: #{tpu_custom_call.1} parent=0 // loop_body
    %s16 = ssub.s32 %s11, 1
    %s17 = ssub.s32 %s11, 2
    %s24 = sadd.s32 1, %s19
    %p25 = scmp.ge.s32.totalorder %s24, 1
    %s26 = scalar_select %p25, 0, %s24
    %s27 = sadd.s32 1, %s18
    %s28 = scalar_select %p25, %s27, %s18
    %p29 = scmp.ge.s32.totalorder %s28, 2
    %s30 = scalar_select %p29, 0, %s28
    %s31 = ssub.s32 %s18, %s30
    %p32 = scmp.eq.s32.totalorder %s31, 0
    %s34 = sadd.s32 %s33, 1
    %s35 = scalar_select %p32, %s33, %s34
    %p38 = pneg %p32
    %p39 = scmp.eq.s32.totalorder %s11, 1
    %p40 = por %p38, %p39
    %p41 = scmp.ne.s32.totalorder %s33, %s36
    %p42 = scmp.eq.s32.totalorder %s11, 0
    %p43 = por %p41, %p42
    %p44 = scmp.ne.s32.totalorder %s33, %s36
    %p45 = scmp.eq.s32.totalorder %s16, 1
    %p46 = por %p44, %p45
    %p47 = scmp.ne.s32.totalorder %s36, %s37
    %p48 = scmp.eq.s32.totalorder %s16, 0
    %p49 = por %p47, %p48
    %p50 = scmp.ne.s32.totalorder %s36, %s37
    %p51 = scmp.eq.s32.totalorder %s17, 1
    %p52 = por %p50, %p51
    %p54 = scmp.ne.s32.totalorder %s37, %s53
    %p55 = scmp.eq.s32.totalorder %s17, 0
    %p56 = por %p54, %p55
    %s58 = sadd.s32 %s57, 1
    %p61 = scmp.eq.s32.totalorder %s11, 1
    %p62 = scmp.ne.s32.totalorder %s57, %s59
    %p63 = scmp.eq.s32.totalorder %s11, 0
    %p64 = por %p62, %p63
    %p65 = scmp.ne.s32.totalorder %s57, %s59
    %p66 = scmp.eq.s32.totalorder %s16, 1
    %p67 = por %p65, %p66
    %p68 = scmp.ne.s32.totalorder %s59, %s60
    %p69 = scmp.eq.s32.totalorder %s16, 0
    %p70 = por %p68, %p69
    %p71 = scmp.ne.s32.totalorder %s59, %s60
    %p72 = scmp.eq.s32.totalorder %s17, 1
    %p73 = por %p71, %p72
    %p75 = scmp.ne.s32.totalorder %s60, %s74
    %p76 = scmp.eq.s32.totalorder %s17, 0
    %p77 = por %p75, %p76
    %s78 = ssub.s32 %s18, %s30
    %s79 = ssub.s32 %s19, %s26
    %s80 = sor.u32 %s78, %s79
    %p81 = scmp.eq.s32.totalorder %s80, 0
    %s83 = sadd.s32 %s82, 1
    %s84 = scalar_select %p81, %s82, %s83
    %p87 = pneg %p81
    %p88 = scmp.eq.s32.totalorder %s11, 1
    %p89 = por %p87, %p88
    %p90 = scmp.ne.s32.totalorder %s82, %s85
    %p91 = scmp.eq.s32.totalorder %s11, 0
    %p92 = por %p90, %p91
    %p93 = scmp.ne.s32.totalorder %s82, %s85
    %p94 = scmp.eq.s32.totalorder %s16, 1
    %p95 = por %p93, %p94
    %p96 = scmp.ne.s32.totalorder %s85, %s86
    %p97 = scmp.eq.s32.totalorder %s16, 0
    %p98 = por %p96, %p97
    %p99 = scmp.ne.s32.totalorder %s85, %s86
    %p100 = scmp.eq.s32.totalorder %s17, 1
    %p101 = por %p99, %p100
    %p103 = scmp.ne.s32.totalorder %s86, %s102
    %p104 = scmp.eq.s32.totalorder %s17, 0
    %p105 = por %p103, %p104
    %s106 = sadd.s32 %s18, %s19
    %s107 = sadd.s32 %s30, %s26
    %s108 = ssub.s32 %s106, %s107
    %p109 = scmp.eq.s32.totalorder %s108, 0
    %s111 = sadd.s32 %s110, 1
    %s112 = scalar_select %p109, %s110, %s111
    %p115 = pneg %p109
    %p116 = scmp.eq.s32.totalorder %s11, 1
    %p117 = por %p115, %p116
    %p118 = scmp.ne.s32.totalorder %s110, %s113
    %p119 = scmp.eq.s32.totalorder %s11, 0
    %p120 = por %p118, %p119
    %p121 = scmp.ne.s32.totalorder %s110, %s113
    %p122 = scmp.eq.s32.totalorder %s16, 1
    %p123 = por %p121, %p122
    %p124 = scmp.ne.s32.totalorder %s113, %s114
    %p125 = scmp.eq.s32.totalorder %s16, 0
    %p126 = por %p124, %p125
    %p127 = scmp.ne.s32.totalorder %s113, %s114
    %p128 = scmp.eq.s32.totalorder %s17, 1
    %p129 = por %p127, %p128
    %p131 = scmp.ne.s32.totalorder %s114, %s130
    %p132 = scmp.eq.s32.totalorder %s17, 0
    %p133 = por %p131, %p132
    %s134 = sadd.s32 %s18, %s19
    %s135 = sadd.s32 %s30, %s26
    %s136 = ssub.s32 %s134, %s135
    %p137 = scmp.eq.s32.totalorder %s136, 0
    %s139 = sadd.s32 %s138, 1
    %s140 = scalar_select %p137, %s138, %s139
    %p143 = pneg %p137
    %p144 = scmp.eq.s32.totalorder %s11, 1
    %p145 = por %p143, %p144
    %p146 = scmp.ne.s32.totalorder %s138, %s141
    %p147 = scmp.eq.s32.totalorder %s11, 0
    %p148 = por %p146, %p147
    %p149 = scmp.ne.s32.totalorder %s138, %s141
    %p150 = scmp.eq.s32.totalorder %s16, 1
    %p151 = por %p149, %p150
    %p152 = scmp.ne.s32.totalorder %s141, %s142
    %p153 = scmp.eq.s32.totalorder %s16, 0
    %p154 = por %p152, %p153
    %p155 = scmp.ne.s32.totalorder %s141, %s142
    %p156 = scmp.eq.s32.totalorder %s17, 1
    %p157 = por %p155, %p156
    %p159 = scmp.ne.s32.totalorder %s142, %s158
    %p160 = scmp.eq.s32.totalorder %s17, 0
    %p161 = por %p159, %p160
    %p162 = scmp.le.s32.totalorder 1, %s11
    %p163 = scmp.lt.s32.totalorder %s11, 3
    %p164 = pnand %p162, %p163
    %p165 = pneg %p164
    // Predicated region
    $region9: #{tpu_custom_call.1} parent=5 // pred_check
      _
    $region10: #{tpu_custom_call.1} parent=5 // pred_check_branch
      %167 = sbr.rel (%p164) target = $region12
    $region11: #{tpu_custom_call.1} parent=5 // pred_region
      %s168 = ssub.s32 %s11, 1
      // Predicated region
      $region13: #{tpu_custom_call.1} parent=11 // pred_check
        %p169 = pneg %p70
      $region14: #{tpu_custom_call.1} parent=11 // pred_check_branch
        %171 = sbr.rel (%p169) target = $region16
      $region15: #{tpu_custom_call.1} parent=11 // pred_region
        _
      $region16: #{tpu_custom_call.1} parent=11 // pred_fallthru
        _
    $region12: #{tpu_custom_call.1} parent=5 // pred_fallthru
      _
    %p172 = scmp.lt.s32.totalorder %s11, 2
    // Predicated region
    $region17: #{tpu_custom_call.1} parent=5 // pred_check
      %p173 = pneg %p172
    $region18: #{tpu_custom_call.1} parent=5 // pred_check_branch
      %175 = sbr.rel (%p173) target = $region20
    $region19: #{tpu_custom_call.1} parent=5 // pred_region
      // Predicated region
      $region21: #{tpu_custom_call.1} parent=19 // pred_check
        %p176 = pneg %p43
      $region22: #{tpu_custom_call.1} parent=19 // pred_check_branch
        %178 = sbr.rel (%p176) target = $region24
      $region23: #{tpu_custom_call.1} parent=19 // pred_region
        %p179 = scmp.lt.s32.totalorder %s18, 1
        %s180 = scalar_select %p179, %s18, 1
        %s181 = smul.addr %s180, 54
        %s182 = smul.addr %s181, 4
        %s183 = scalar_lea.vmem %s0, %s182
      $region24: #{tpu_custom_call.1} parent=19 // pred_fallthru
        _
    $region20: #{tpu_custom_call.1} parent=5 // pred_fallthru
      _
    %p184 = scmp.le.s32.totalorder 1, %s11
    %p185 = scmp.lt.s32.totalorder %s11, 3
    %p186 = pnand %p184, %p185
    %p187 = pneg %p186
    // Predicated region
    $region25: #{tpu_custom_call.1} parent=5 // pred_check
      _
    $region26: #{tpu_custom_call.1} parent=5 // pred_check_branch
      %189 = sbr.rel (%p186) target = $region28
    $region27: #{tpu_custom_call.1} parent=5 // pred_region
      %s190 = ssub.s32 %s11, 1
      %p191 = scmp.lt.s32.totalorder %s20, 1
      %s192 = scalar_select %p191, %s20, 1
      %s193 = smul.addr %s192, 54
      %s194 = smul.addr %s193, 4
      %s195 = scalar_lea.vmem %s0, %s194
      %p196 = pneg %p49
      %p197 = pneg %p46
      %p198 = pneg %p70
      %p199 = pneg %p67
      %p200 = pneg %p98
      %p201 = pneg %p95
      %s202 = smul.u32 16, %s21
      %p203 = scmp.lt.s32.totalorder %s20, 1
      %s204 = scalar_select %p203, %s20, 1
      %p205 = scmp.lt.s32.totalorder %s202, 15
      %s206 = scalar_select %p205, %s202, 15
      %s207 = smul.addr %s206, 2
      %s208 = smul.addr %s204, 32
      %s209 = sadd.s32 %s207, %s208
      %s210 = smul.addr %s209, 4
      %s211 = scalar_lea.vmem %s2, %s210
      %p212 = pneg %p126
      %p213 = pneg %p123
      %s214 = sadd.s32 %s20, %s21
      %p215 = scmp.lt.s32.totalorder %s214, 1
      %s216 = scalar_select %p215, %s214, 1
      %s217 = smul.addr %s216, 8
      %s218 = scalar_lea.vmem %s3, %s217
      %p219 = pneg %p154
      %p220 = pneg %p151
      %s221 = sadd.s32 %s20, %s21
      %p222 = scmp.lt.s32.totalorder %s221, 1
      %s223 = scalar_select %p222, %s221, 1
      %s224 = smul.addr %s223, 8
      %s225 = scalar_lea.vmem %s4, %s224
      %p226 = scmp.lt.s32.totalorder %s20, 1
      %s227 = scalar_select %p226, %s20, 1
      %s228 = smul.addr %s227, 54
      %s229 = smul.addr %s228, 4
      %s230 = scalar_lea.vmem %s0, %s229
      %s231 = smul.u32 16, %s21
      %p232 = scmp.lt.s32.totalorder %s20, 1
      %s233 = scalar_select %p232, %s20, 1
      %p234 = scmp.lt.s32.totalorder %s231, 15
      %s235 = scalar_select %p234, %s231, 15
      %s236 = smul.addr %s235, 2
      %s237 = smul.addr %s233, 32
      %s238 = sadd.s32 %s236, %s237
      %s239 = smul.addr %s238, 4
      %s240 = scalar_lea.vmem %s2, %s239
      %s241 = smul.u32 16, %s21
      %s242 = sadd.s32 %s20, %s21
      %p243 = scmp.lt.s32.totalorder %s242, 1
      %s244 = scalar_select %p243, %s242, 1
      %s245 = smul.addr %s244, 8
      %s246 = scalar_lea.vmem %s3, %s245
      %s247 = sadd.s32 %s20, %s21
      %s248 = sadd.s32 %s20, %s21
      %p249 = scmp.lt.s32.totalorder %s248, 1
      %s250 = scalar_select %p249, %s248, 1
      %s251 = smul.addr %s250, 8
      %s252 = scalar_lea.vmem %s4, %s251
      %s253 = sadd.s32 %s20, %s21
      %s254 = smul.u32 %s21, 16
      %s255 = ssub.s32 16, %s254
      %p256 = scmp.lt.s32.totalorder %s255, 16
      %s257 = scalar_select %p256, %s255, 16
      // While loop
      $region29: #{tpu_custom_call.1} parent=27 // loop_pre_header
        _
      $region30: #{tpu_custom_call.1} parent=27 // loop_header
        %s259 = sphi 0, %s261
        %p260 = scmp.ge.s32.totalorder %s259, %s257
        %v264 = vphi 0.0, %v1135
        %v265 = vphi 0.0, %v1147
      $region31: #{tpu_custom_call.1} parent=27 // loop_header_branch
        %263 = sbr.rel (%p260) target = $region35
      $region32: #{tpu_custom_call.1} parent=27 // loop_body
        %s266 = sadd.s32 %s254, %s259
        %s267 = smul.u32 %s266, 3
        %s268 = smul.addr %s267, 4
        %s269 = scalar_lea.vmem %s230, %s268
        %v270 = vld [vmem:[%s269] sm:$0xf]
        %v271 = vld [vmem:[%s269 + $0x4] sm:$0xf]
        %v272 = vld [vmem:[%s1] sm:$0xf]
        %v273 = vld [vmem:[%s1 + $0x4] sm:$0xf]
        %v274 = vld [vmem:[%s1 + $0x8] sm:$0xf]
        %v275 = vld [vmem:[%s1 + $0xc] sm:$0xf]
        %v276 = vld [vmem:[%s1 + $0x10] sm:$0xf]
        %v277 = vld [vmem:[%s1 + $0x14] sm:$0xf]
        %v278 = vld [vmem:[%s1 + $0x18] sm:$0xf]
        %v279 = vld [vmem:[%s1 + $0x1c] sm:$0xf]
        %v280 = vld [vmem:[%s1 + $0x20] sm:$0xf]
        %v281 = vld [vmem:[%s1 + $0x24] sm:$0xf]
        %v282 = vld [vmem:[%s1 + $0x28] sm:$0xf]
        %v283 = vld [vmem:[%s1 + $0x2c] sm:$0xf]
        %v284 = vld [vmem:[%s1 + $0x30] sm:$0xf]
        %v285 = vld [vmem:[%s1 + $0x34] sm:$0xf]
        %v286 = vld [vmem:[%s1 + $0x38] sm:$0xf]
        %v287 = vld [vmem:[%s1 + $0x3c] sm:$0xf]
        %v288 = vld [vmem:[%s269 + $0x8] sm:$0x1]
        %s289 = scalar_lea.vmem %s1, 64
        %v290 = vld [vmem:[%s289] sm:$0xf]
        %v291 = vld [vmem:[%s289 + $0x4] sm:$0xf]
        %v292 = vld [vmem:[%s289 + $0x8] sm:$0xf]
        %v293 = vld [vmem:[%s289 + $0xc] sm:$0xf]
        %v294 = vld [vmem:[%s289 + $0x10] sm:$0xf]
        %v295 = vld [vmem:[%s289 + $0x14] sm:$0xf]
        %v296 = vld [vmem:[%s289 + $0x18] sm:$0xf]
        %v297 = vld [vmem:[%s289 + $0x1c] sm:$0xf]
        %v298 = vld [vmem:[%s289 + $0x20] sm:$0xf]
        %v299 = vld [vmem:[%s289 + $0x24] sm:$0xf]
        %v300 = vld [vmem:[%s289 + $0x28] sm:$0xf]
        %v301 = vld [vmem:[%s289 + $0x2c] sm:$0xf]
        %v302 = vld [vmem:[%s289 + $0x30] sm:$0xf]
        %v303 = vld [vmem:[%s289 + $0x34] sm:$0xf]
        %v304 = vld [vmem:[%s289 + $0x38] sm:$0xf]
        %v305 = vld [vmem:[%s289 + $0x3c] sm:$0xf]
        %v309 = vunpack.c.l.b16 %v270
        %v310 = vunpack.c.l.b16 %v271
        %v311 = vunpack.c.l.b16 %v288
        %v312 = vpack.c.b16 %v310, %v309
        %v313 = vpack.c.b16 %v311, %v311
        %vm314 = vsmask.f32 7424
        %v316 = vshrl.u32 %v312, 16
        %v318 = vshll.u32 %v312, 16
        %v320 = vrot.slane %v318, 1
        %v321 = vor.u32 %v316, %v320
        %v323 = vshll.u32 %v313, 16
        %v325 = vrot.slane %v323, 1
        %v326 = vsel %vm314, %v321, %v325
        %v344 = vunpack.c.l.b16 %v290
        %v345 = vunpack.c.l.b16 %v291
        %v346 = vunpack.c.l.b16 %v292
        %v347 = vunpack.c.l.b16 %v293
        %v348 = vunpack.c.l.b16 %v294
        %v349 = vunpack.c.l.b16 %v295
        %v350 = vunpack.c.l.b16 %v296
        %v351 = vunpack.c.l.b16 %v297
        %v352 = vunpack.c.l.b16 %v298
        %v353 = vunpack.c.l.b16 %v299
        %v354 = vunpack.c.l.b16 %v300
        %v355 = vunpack.c.l.b16 %v301
        %v356 = vunpack.c.l.b16 %v302
        %v357 = vunpack.c.l.b16 %v303
        %v358 = vunpack.c.l.b16 %v304
        %v359 = vunpack.c.l.b16 %v305
        %v360 = vpack.c.b16 %v345, %v344
        %v361 = vpack.c.b16 %v347, %v346
        %v362 = vpack.c.b16 %v349, %v348
        %v363 = vpack.c.b16 %v351, %v350
        %v364 = vpack.c.b16 %v353, %v352
        %v365 = vpack.c.b16 %v355, %v354
        %v366 = vpack.c.b16 %v357, %v356
        %v367 = vpack.c.b16 %v359, %v358
        %376 = vmatpush.bf16.msra.mxu0 %v367
        %377 = vmatpush.bf16.msra.mxu0 %v366
        %378 = vmatpush.bf16.msra.mxu0 %v365
        %379 = vmatpush.bf16.msra.mxu0 %v364
        %380 = vmatpush.bf16.msra.mxu0 %v363
        %381 = vmatpush.bf16.msra.mxu0 %v362
        %382 = vmatpush.bf16.msra.mxu0 %v361
        %383 = vmatpush.bf16.msra.mxu0 %v360
        %384 = vmatmul.bf16.gmra.mxu0 %v326
        %v385 = vpop.f32.mrf.mxu0
        %v386 = vadd.f32 0.0, %v385
        %v387 = vpop.f32.mrf.mxu0
        %v388 = vadd.f32 0.0, %v387
        %389 = vdwg.mxu0
        %v407 = vunpack.c.l.b16 %v272
        %v408 = vunpack.c.l.b16 %v273
        %v409 = vunpack.c.l.b16 %v274
        %v410 = vunpack.c.l.b16 %v275
        %v411 = vunpack.c.l.b16 %v276
        %v412 = vunpack.c.l.b16 %v277
        %v413 = vunpack.c.l.b16 %v278
        %v414 = vunpack.c.l.b16 %v279
        %v415 = vunpack.c.l.b16 %v280
        %v416 = vunpack.c.l.b16 %v281
        %v417 = vunpack.c.l.b16 %v282
        %v418 = vunpack.c.l.b16 %v283
        %v419 = vunpack.c.l.b16 %v284
        %v420 = vunpack.c.l.b16 %v285
        %v421 = vunpack.c.l.b16 %v286
        %v422 = vunpack.c.l.b16 %v287
        %v423 = vpack.c.b16 %v408, %v407
        %v424 = vpack.c.b16 %v410, %v409
        %v425 = vpack.c.b16 %v412, %v411
        %v426 = vpack.c.b16 %v414, %v413
        %v427 = vpack.c.b16 %v416, %v415
        %v428 = vpack.c.b16 %v418, %v417
        %v429 = vpack.c.b16 %v420, %v419
        %v430 = vpack.c.b16 %v422, %v421
        %439 = vmatpush.bf16.msra.mxu0 %v430
        %440 = vmatpush.bf16.msra.mxu0 %v429
        %441 = vmatpush.bf16.msra.mxu0 %v428
        %442 = vmatpush.bf16.msra.mxu0 %v427
        %443 = vmatpush.bf16.msra.mxu0 %v426
        %444 = vmatpush.bf16.msra.mxu0 %v425
        %445 = vmatpush.bf16.msra.mxu0 %v424
        %446 = vmatpush.bf16.msra.mxu0 %v423
        %447 = vmatmul.bf16.gmra.mxu0 %v312
        %v448 = vpop.f32.mrf.mxu0
        %v449 = vadd.f32 %v386, %v448
        %v450 = vpop.f32.mrf.mxu0
        %v451 = vadd.f32 %v388, %v450
        %452 = vdwg.mxu0
        %v453 = vld [vmem:[%s269] sm:$0xe]
        %s454 = scalar_lea.vmem %s1, 128
        %v455 = vld [vmem:[%s454] sm:$0xf]
        %v456 = vld [vmem:[%s454 + $0x4] sm:$0xf]
        %v457 = vld [vmem:[%s454 + $0x8] sm:$0xf]
        %v458 = vld [vmem:[%s454 + $0xc] sm:$0xf]
        %v459 = vld [vmem:[%s454 + $0x10] sm:$0xf]
        %v460 = vld [vmem:[%s454 + $0x14] sm:$0xf]
        %v461 = vld [vmem:[%s454 + $0x18] sm:$0xf]
        %v462 = vld [vmem:[%s454 + $0x1c] sm:$0xf]
        %v463 = vld [vmem:[%s454 + $0x20] sm:$0xf]
        %v464 = vld [vmem:[%s454 + $0x24] sm:$0xf]
        %v465 = vld [vmem:[%s454 + $0x28] sm:$0xf]
        %v466 = vld [vmem:[%s454 + $0x2c] sm:$0xf]
        %v467 = vld [vmem:[%s454 + $0x30] sm:$0xf]
        %v468 = vld [vmem:[%s454 + $0x34] sm:$0xf]
        %v469 = vld [vmem:[%s454 + $0x38] sm:$0xf]
        %v470 = vld [vmem:[%s454 + $0x3c] sm:$0xf]
        %v472 = vunpack.c.l.b16 %v453
        %v473 = vpack.c.b16 %v310, %v472
        %vm474 = vcmask 1046528
        %v475 = vrot.slane %v473, 1
        %v476 = vrot.slane %v313, 1
        %v477 = vsel %vm474, %v475, %v476
        %v495 = vunpack.c.l.b16 %v455
        %v496 = vunpack.c.l.b16 %v456
        %v497 = vunpack.c.l.b16 %v457
        %v498 = vunpack.c.l.b16 %v458
        %v499 = vunpack.c.l.b16 %v459
        %v500 = vunpack.c.l.b16 %v460
        %v501 = vunpack.c.l.b16 %v461
        %v502 = vunpack.c.l.b16 %v462
        %v503 = vunpack.c.l.b16 %v463
        %v504 = vunpack.c.l.b16 %v464
        %v505 = vunpack.c.l.b16 %v465
        %v506 = vunpack.c.l.b16 %v466
        %v507 = vunpack.c.l.b16 %v467
        %v508 = vunpack.c.l.b16 %v468
        %v509 = vunpack.c.l.b16 %v469
        %v510 = vunpack.c.l.b16 %v470
        %v511 = vpack.c.b16 %v496, %v495
        %v512 = vpack.c.b16 %v498, %v497
        %v513 = vpack.c.b16 %v500, %v499
        %v514 = vpack.c.b16 %v502, %v501
        %v515 = vpack.c.b16 %v504, %v503
        %v516 = vpack.c.b16 %v506, %v505
        %v517 = vpack.c.b16 %v508, %v507
        %v518 = vpack.c.b16 %v510, %v509
        %527 = vmatpush.bf16.msra.mxu0 %v518
        %528 = vmatpush.bf16.msra.mxu0 %v517
        %529 = vmatpush.bf16.msra.mxu0 %v516
        %530 = vmatpush.bf16.msra.mxu0 %v515
        %531 = vmatpush.bf16.msra.mxu0 %v514
        %532 = vmatpush.bf16.msra.mxu0 %v513
        %533 = vmatpush.bf16.msra.mxu0 %v512
        %534 = vmatpush.bf16.msra.mxu0 %v511
        %535 = vmatmul.bf16.gmra.mxu0 %v477
        %v536 = vpop.f32.mrf.mxu0
        %v537 = vadd.f32 0.0, %v536
        %v538 = vpop.f32.mrf.mxu0
        %v539 = vadd.f32 0.0, %v538
        %540 = vdwg.mxu0
        %v541 = vadd.f32 %v449, %v537
        %v542 = vadd.f32 %v451, %v539
        %s543 = sadd.s32 %s266, 1
        %s544 = smul.u32 %s543, 3
        %s545 = smul.addr %s544, 4
        %s546 = scalar_lea.vmem %s230, %s545
        %v547 = vld [vmem:[%s546] sm:$0xf]
        %v548 = vld [vmem:[%s546 + $0x4] sm:$0xf]
        %s549 = scalar_lea.vmem %s1, 192
        %v550 = vld [vmem:[%s549] sm:$0xf]
        %v551 = vld [vmem:[%s549 + $0x4] sm:$0xf]
        %v552 = vld [vmem:[%s549 + $0x8] sm:$0xf]
        %v553 = vld [vmem:[%s549 + $0xc] sm:$0xf]
        %v554 = vld [vmem:[%s549 + $0x10] sm:$0xf]
        %v555 = vld [vmem:[%s549 + $0x14] sm:$0xf]
        %v556 = vld [vmem:[%s549 + $0x18] sm:$0xf]
        %v557 = vld [vmem:[%s549 + $0x1c] sm:$0xf]
        %v558 = vld [vmem:[%s549 + $0x20] sm:$0xf]
        %v559 = vld [vmem:[%s549 + $0x24] sm:$0xf]
        %v560 = vld [vmem:[%s549 + $0x28] sm:$0xf]
        %v561 = vld [vmem:[%s549 + $0x2c] sm:$0xf]
        %v562 = vld [vmem:[%s549 + $0x30] sm:$0xf]
        %v563 = vld [vmem:[%s549 + $0x34] sm:$0xf]
        %v564 = vld [vmem:[%s549 + $0x38] sm:$0xf]
        %v565 = vld [vmem:[%s549 + $0x3c] sm:$0xf]
        %v568 = vunpack.c.l.b16 %v547
        %v569 = vunpack.c.l.b16 %v548
        %v570 = vpack.c.b16 %v569, %v568
        %v588 = vunpack.c.l.b16 %v550
        %v589 = vunpack.c.l.b16 %v551
        %v590 = vunpack.c.l.b16 %v552
        %v591 = vunpack.c.l.b16 %v553
        %v592 = vunpack.c.l.b16 %v554
        %v593 = vunpack.c.l.b16 %v555
        %v594 = vunpack.c.l.b16 %v556
        %v595 = vunpack.c.l.b16 %v557
        %v596 = vunpack.c.l.b16 %v558
        %v597 = vunpack.c.l.b16 %v559
        %v598 = vunpack.c.l.b16 %v560
        %v599 = vunpack.c.l.b16 %v561
        %v600 = vunpack.c.l.b16 %v562
        %v601 = vunpack.c.l.b16 %v563
        %v602 = vunpack.c.l.b16 %v564
        %v603 = vunpack.c.l.b16 %v565
        %v604 = vpack.c.b16 %v589, %v588
        %v605 = vpack.c.b16 %v591, %v590
        %v606 = vpack.c.b16 %v593, %v592
        %v607 = vpack.c.b16 %v595, %v594
        %v608 = vpack.c.b16 %v597, %v596
        %v609 = vpack.c.b16 %v599, %v598
        %v610 = vpack.c.b16 %v601, %v600
        %v611 = vpack.c.b16 %v603, %v602
        %620 = vmatpush.bf16.msra.mxu0 %v611
        %621 = vmatpush.bf16.msra.mxu0 %v610
        %622 = vmatpush.bf16.msra.mxu0 %v609
        %623 = vmatpush.bf16.msra.mxu0 %v608
        %624 = vmatpush.bf16.msra.mxu0 %v607
        %625 = vmatpush.bf16.msra.mxu0 %v606
        %626 = vmatpush.bf16.msra.mxu0 %v605
        %627 = vmatpush.bf16.msra.mxu0 %v604
        %628 = vmatmul.bf16.gmra.mxu0 %v570
        %v629 = vpop.f32.mrf.mxu0
        %v630 = vadd.f32 0.0, %v629
        %v631 = vpop.f32.mrf.mxu0
        %v632 = vadd.f32 0.0, %v631
        %633 = vdwg.mxu0
        %v634 = vadd.f32 %v541, %v630
        %v635 = vadd.f32 %v542, %v632
        %v636 = vld [vmem:[%s546] sm:$0xf]
        %v637 = vld [vmem:[%s546 + $0x4] sm:$0xf]
        %v638 = vld [vmem:[%s546 + $0x8] sm:$0x1]
        %s639 = scalar_lea.vmem %s1, 256
        %v640 = vld [vmem:[%s639] sm:$0xf]
        %v641 = vld [vmem:[%s639 + $0x4] sm:$0xf]
        %v642 = vld [vmem:[%s639 + $0x8] sm:$0xf]
        %v643 = vld [vmem:[%s639 + $0xc] sm:$0xf]
        %v644 = vld [vmem:[%s639 + $0x10] sm:$0xf]
        %v645 = vld [vmem:[%s639 + $0x14] sm:$0xf]
        %v646 = vld [vmem:[%s639 + $0x18] sm:$0xf]
        %v647 = vld [vmem:[%s639 + $0x1c] sm:$0xf]
        %v648 = vld [vmem:[%s639 + $0x20] sm:$0xf]
        %v649 = vld [vmem:[%s639 + $0x24] sm:$0xf]
        %v650 = vld [vmem:[%s639 + $0x28] sm:$0xf]
        %v651 = vld [vmem:[%s639 + $0x2c] sm:$0xf]
        %v652 = vld [vmem:[%s639 + $0x30] sm:$0xf]
        %v653 = vld [vmem:[%s639 + $0x34] sm:$0xf]
        %v654 = vld [vmem:[%s639 + $0x38] sm:$0xf]
        %v655 = vld [vmem:[%s639 + $0x3c] sm:$0xf]
        %v659 = vunpack.c.l.b16 %v636
        %v660 = vunpack.c.l.b16 %v637
        %v661 = vunpack.c.l.b16 %v638
        %v662 = vpack.c.b16 %v660, %v659
        %v663 = vpack.c.b16 %v661, %v661
        %v665 = vshrl.u32 %v662, 16
        %v667 = vshll.u32 %v662, 16
        %v669 = vrot.slane %v667, 1
        %v670 = vor.u32 %v665, %v669
        %v672 = vshll.u32 %v663, 16
        %v674 = vrot.slane %v672, 1
        %v675 = vsel %vm314, %v670, %v674
        %v693 = vunpack.c.l.b16 %v640
        %v694 = vunpack.c.l.b16 %v641
        %v695 = vunpack.c.l.b16 %v642
        %v696 = vunpack.c.l.b16 %v643
        %v697 = vunpack.c.l.b16 %v644
        %v698 = vunpack.c.l.b16 %v645
        %v699 = vunpack.c.l.b16 %v646
        %v700 = vunpack.c.l.b16 %v647
        %v701 = vunpack.c.l.b16 %v648
        %v702 = vunpack.c.l.b16 %v649
        %v703 = vunpack.c.l.b16 %v650
        %v704 = vunpack.c.l.b16 %v651
        %v705 = vunpack.c.l.b16 %v652
        %v706 = vunpack.c.l.b16 %v653
        %v707 = vunpack.c.l.b16 %v654
        %v708 = vunpack.c.l.b16 %v655
        %v709 = vpack.c.b16 %v694, %v693
        %v710 = vpack.c.b16 %v696, %v695
        %v711 = vpack.c.b16 %v698, %v697
        %v712 = vpack.c.b16 %v700, %v699
        %v713 = vpack.c.b16 %v702, %v701
        %v714 = vpack.c.b16 %v704, %v703
        %v715 = vpack.c.b16 %v706, %v705
        %v716 = vpack.c.b16 %v708, %v707
        %725 = vmatpush.bf16.msra.mxu0 %v716
        %726 = vmatpush.bf16.msra.mxu0 %v715
        %727 = vmatpush.bf16.msra.mxu0 %v714
        %728 = vmatpush.bf16.msra.mxu0 %v713
        %729 = vmatpush.bf16.msra.mxu0 %v712
        %730 = vmatpush.bf16.msra.mxu0 %v711
        %731 = vmatpush.bf16.msra.mxu0 %v710
        %732 = vmatpush.bf16.msra.mxu0 %v709
        %733 = vmatmul.bf16.gmra.mxu0 %v675
        %v734 = vpop.f32.mrf.mxu0
        %v735 = vadd.f32 0.0, %v734
        %v736 = vpop.f32.mrf.mxu0
        %v737 = vadd.f32 0.0, %v736
        %738 = vdwg.mxu0
        %v739 = vadd.f32 %v634, %v735
        %v740 = vadd.f32 %v635, %v737
        %v741 = vld [vmem:[%s546] sm:$0xe]
        %s742 = scalar_lea.vmem %s1, 320
        %v743 = vld [vmem:[%s742] sm:$0xf]
        %v744 = vld [vmem:[%s742 + $0x4] sm:$0xf]
        %v745 = vld [vmem:[%s742 + $0x8] sm:$0xf]
        %v746 = vld [vmem:[%s742 + $0xc] sm:$0xf]
        %v747 = vld [vmem:[%s742 + $0x10] sm:$0xf]
        %v748 = vld [vmem:[%s742 + $0x14] sm:$0xf]
        %v749 = vld [vmem:[%s742 + $0x18] sm:$0xf]
        %v750 = vld [vmem:[%s742 + $0x1c] sm:$0xf]
        %v751 = vld [vmem:[%s742 + $0x20] sm:$0xf]
        %v752 = vld [vmem:[%s742 + $0x24] sm:$0xf]
        %v753 = vld [vmem:[%s742 + $0x28] sm:$0xf]
        %v754 = vld [vmem:[%s742 + $0x2c] sm:$0xf]
        %v755 = vld [vmem:[%s742 + $0x30] sm:$0xf]
        %v756 = vld [vmem:[%s742 + $0x34] sm:$0xf]
        %v757 = vld [vmem:[%s742 + $0x38] sm:$0xf]
        %v758 = vld [vmem:[%s742 + $0x3c] sm:$0xf]
        %v760 = vunpack.c.l.b16 %v741
        %v761 = vpack.c.b16 %v660, %v760
        %v762 = vrot.slane %v761, 1
        %v763 = vrot.slane %v663, 1
        %v764 = vsel %vm474, %v762, %v763
        %v782 = vunpack.c.l.b16 %v743
        %v783 = vunpack.c.l.b16 %v744
        %v784 = vunpack.c.l.b16 %v745
        %v785 = vunpack.c.l.b16 %v746
        %v786 = vunpack.c.l.b16 %v747
        %v787 = vunpack.c.l.b16 %v748
        %v788 = vunpack.c.l.b16 %v749
        %v789 = vunpack.c.l.b16 %v750
        %v790 = vunpack.c.l.b16 %v751
        %v791 = vunpack.c.l.b16 %v752
        %v792 = vunpack.c.l.b16 %v753
        %v793 = vunpack.c.l.b16 %v754
        %v794 = vunpack.c.l.b16 %v755
        %v795 = vunpack.c.l.b16 %v756
        %v796 = vunpack.c.l.b16 %v757
        %v797 = vunpack.c.l.b16 %v758
        %v798 = vpack.c.b16 %v783, %v782
        %v799 = vpack.c.b16 %v785, %v784
        %v800 = vpack.c.b16 %v787, %v786
        %v801 = vpack.c.b16 %v789, %v788
        %v802 = vpack.c.b16 %v791, %v790
        %v803 = vpack.c.b16 %v793, %v792
        %v804 = vpack.c.b16 %v795, %v794
        %v805 = vpack.c.b16 %v797, %v796
        %814 = vmatpush.bf16.msra.mxu0 %v805
        %815 = vmatpush.bf16.msra.mxu0 %v804
        %816 = vmatpush.bf16.msra.mxu0 %v803
        %817 = vmatpush.bf16.msra.mxu0 %v802
        %818 = vmatpush.bf16.msra.mxu0 %v801
        %819 = vmatpush.bf16.msra.mxu0 %v800
        %820 = vmatpush.bf16.msra.mxu0 %v799
        %821 = vmatpush.bf16.msra.mxu0 %v798
        %822 = vmatmul.bf16.gmra.mxu0 %v764
        %v823 = vpop.f32.mrf.mxu0
        %v824 = vadd.f32 0.0, %v823
        %v825 = vpop.f32.mrf.mxu0
        %v826 = vadd.f32 0.0, %v825
        %827 = vdwg.mxu0
        %v828 = vadd.f32 %v739, %v824
        %v829 = vadd.f32 %v740, %v826
        %s830 = sadd.s32 %s266, 2
        %s831 = smul.u32 %s830, 3
        %s832 = smul.addr %s831, 4
        %s833 = scalar_lea.vmem %s230, %s832
        %v834 = vld [vmem:[%s833] sm:$0xf]
        %v835 = vld [vmem:[%s833 + $0x4] sm:$0xf]
        %s836 = scalar_lea.vmem %s1, 384
        %v837 = vld [vmem:[%s836] sm:$0xf]
        %v838 = vld [vmem:[%s836 + $0x4] sm:$0xf]
        %v839 = vld [vmem:[%s836 + $0x8] sm:$0xf]
        %v840 = vld [vmem:[%s836 + $0xc] sm:$0xf]
        %v841 = vld [vmem:[%s836 + $0x10] sm:$0xf]
        %v842 = vld [vmem:[%s836 + $0x14] sm:$0xf]
        %v843 = vld [vmem:[%s836 + $0x18] sm:$0xf]
        %v844 = vld [vmem:[%s836 + $0x1c] sm:$0xf]
        %v845 = vld [vmem:[%s836 + $0x20] sm:$0xf]
        %v846 = vld [vmem:[%s836 + $0x24] sm:$0xf]
        %v847 = vld [vmem:[%s836 + $0x28] sm:$0xf]
        %v848 = vld [vmem:[%s836 + $0x2c] sm:$0xf]
        %v849 = vld [vmem:[%s836 + $0x30] sm:$0xf]
        %v850 = vld [vmem:[%s836 + $0x34] sm:$0xf]
        %v851 = vld [vmem:[%s836 + $0x38] sm:$0xf]
        %v852 = vld [vmem:[%s836 + $0x3c] sm:$0xf]
        %v855 = vunpack.c.l.b16 %v834
        %v856 = vunpack.c.l.b16 %v835
        %v857 = vpack.c.b16 %v856, %v855
        %v875 = vunpack.c.l.b16 %v837
        %v876 = vunpack.c.l.b16 %v838
        %v877 = vunpack.c.l.b16 %v839
        %v878 = vunpack.c.l.b16 %v840
        %v879 = vunpack.c.l.b16 %v841
        %v880 = vunpack.c.l.b16 %v842
        %v881 = vunpack.c.l.b16 %v843
        %v882 = vunpack.c.l.b16 %v844
        %v883 = vunpack.c.l.b16 %v845
        %v884 = vunpack.c.l.b16 %v846
        %v885 = vunpack.c.l.b16 %v847
        %v886 = vunpack.c.l.b16 %v848
        %v887 = vunpack.c.l.b16 %v849
        %v888 = vunpack.c.l.b16 %v850
        %v889 = vunpack.c.l.b16 %v851
        %v890 = vunpack.c.l.b16 %v852
        %v891 = vpack.c.b16 %v876, %v875
        %v892 = vpack.c.b16 %v878, %v877
        %v893 = vpack.c.b16 %v880, %v879
        %v894 = vpack.c.b16 %v882, %v881
        %v895 = vpack.c.b16 %v884, %v883
        %v896 = vpack.c.b16 %v886, %v885
        %v897 = vpack.c.b16 %v888, %v887
        %v898 = vpack.c.b16 %v890, %v889
        %907 = vmatpush.bf16.msra.mxu0 %v898
        %908 = vmatpush.bf16.msra.mxu0 %v897
        %909 = vmatpush.bf16.msra.mxu0 %v896
        %910 = vmatpush.bf16.msra.mxu0 %v895
        %911 = vmatpush.bf16.msra.mxu0 %v894
        %912 = vmatpush.bf16.msra.mxu0 %v893
        %913 = vmatpush.bf16.msra.mxu0 %v892
        %914 = vmatpush.bf16.msra.mxu0 %v891
        %915 = vmatmul.bf16.gmra.mxu0 %v857
        %v916 = vpop.f32.mrf.mxu0
        %v917 = vadd.f32 0.0, %v916
        %v918 = vpop.f32.mrf.mxu0
        %v919 = vadd.f32 0.0, %v918
        %920 = vdwg.mxu0
        %v921 = vadd.f32 %v828, %v917
        %v922 = vadd.f32 %v829, %v919
        %v923 = vld [vmem:[%s833] sm:$0xf]
        %v924 = vld [vmem:[%s833 + $0x4] sm:$0xf]
        %v925 = vld [vmem:[%s833 + $0x8] sm:$0x1]
        %s926 = scalar_lea.vmem %s1, 448
        %v927 = vld [vmem:[%s926] sm:$0xf]
        %v928 = vld [vmem:[%s926 + $0x4] sm:$0xf]
        %v929 = vld [vmem:[%s926 + $0x8] sm:$0xf]
        %v930 = vld [vmem:[%s926 + $0xc] sm:$0xf]
        %v931 = vld [vmem:[%s926 + $0x10] sm:$0xf]
        %v932 = vld [vmem:[%s926 + $0x14] sm:$0xf]
        %v933 = vld [vmem:[%s926 + $0x18] sm:$0xf]
        %v934 = vld [vmem:[%s926 + $0x1c] sm:$0xf]
        %v935 = vld [vmem:[%s926 + $0x20] sm:$0xf]
        %v936 = vld [vmem:[%s926 + $0x24] sm:$0xf]
        %v937 = vld [vmem:[%s926 + $0x28] sm:$0xf]
        %v938 = vld [vmem:[%s926 + $0x2c] sm:$0xf]
        %v939 = vld [vmem:[%s926 + $0x30] sm:$0xf]
        %v940 = vld [vmem:[%s926 + $0x34] sm:$0xf]
        %v941 = vld [vmem:[%s926 + $0x38] sm:$0xf]
        %v942 = vld [vmem:[%s926 + $0x3c] sm:$0xf]
        %v946 = vunpack.c.l.b16 %v923
        %v947 = vunpack.c.l.b16 %v924
        %v948 = vunpack.c.l.b16 %v925
        %v949 = vpack.c.b16 %v947, %v946
        %v950 = vpack.c.b16 %v948, %v948
        %v952 = vshrl.u32 %v949, 16
        %v954 = vshll.u32 %v949, 16
        %v956 = vrot.slane %v954, 1
        %v957 = vor.u32 %v952, %v956
        %v959 = vshll.u32 %v950, 16
        %v961 = vrot.slane %v959, 1
        %v962 = vsel %vm314, %v957, %v961
        %v980 = vunpack.c.l.b16 %v927
        %v981 = vunpack.c.l.b16 %v928
        %v982 = vunpack.c.l.b16 %v929
        %v983 = vunpack.c.l.b16 %v930
        %v984 = vunpack.c.l.b16 %v931
        %v985 = vunpack.c.l.b16 %v932
        %v986 = vunpack.c.l.b16 %v933
        %v987 = vunpack.c.l.b16 %v934
        %v988 = vunpack.c.l.b16 %v935
        %v989 = vunpack.c.l.b16 %v936
        %v990 = vunpack.c.l.b16 %v937
        %v991 = vunpack.c.l.b16 %v938
        %v992 = vunpack.c.l.b16 %v939
        %v993 = vunpack.c.l.b16 %v940
        %v994 = vunpack.c.l.b16 %v941
        %v995 = vunpack.c.l.b16 %v942
        %v996 = vpack.c.b16 %v981, %v980
        %v997 = vpack.c.b16 %v983, %v982
        %v998 = vpack.c.b16 %v985, %v984
        %v999 = vpack.c.b16 %v987, %v986
        %v1000 = vpack.c.b16 %v989, %v988
        %v1001 = vpack.c.b16 %v991, %v990
        %v1002 = vpack.c.b16 %v993, %v992
        %v1003 = vpack.c.b16 %v995, %v994
        %1012 = vmatpush.bf16.msra.mxu0 %v1003
        %1013 = vmatpush.bf16.msra.mxu0 %v1002
        %1014 = vmatpush.bf16.msra.mxu0 %v1001
        %1015 = vmatpush.bf16.msra.mxu0 %v1000
        %1016 = vmatpush.bf16.msra.mxu0 %v999
        %1017 = vmatpush.bf16.msra.mxu0 %v998
        %1018 = vmatpush.bf16.msra.mxu0 %v997
        %1019 = vmatpush.bf16.msra.mxu0 %v996
        %1020 = vmatmul.bf16.gmra.mxu0 %v962
        %v1021 = vpop.f32.mrf.mxu0
        %v1022 = vadd.f32 0.0, %v1021
        %v1023 = vpop.f32.mrf.mxu0
        %v1024 = vadd.f32 0.0, %v1023
        %1025 = vdwg.mxu0
        %v1026 = vadd.f32 %v921, %v1022
        %v1027 = vadd.f32 %v922, %v1024
        %v1028 = vld [vmem:[%s833] sm:$0xe]
        %s1029 = scalar_lea.vmem %s1, 512
        %v1030 = vld [vmem:[%s1029] sm:$0xf]
        %v1031 = vld [vmem:[%s1029 + $0x4] sm:$0xf]
        %v1032 = vld [vmem:[%s1029 + $0x8] sm:$0xf]
        %v1033 = vld [vmem:[%s1029 + $0xc] sm:$0xf]
        %v1034 = vld [vmem:[%s1029 + $0x10] sm:$0xf]
        %v1035 = vld [vmem:[%s1029 + $0x14] sm:$0xf]
        %v1036 = vld [vmem:[%s1029 + $0x18] sm:$0xf]
        %v1037 = vld [vmem:[%s1029 + $0x1c] sm:$0xf]
        %v1038 = vld [vmem:[%s1029 + $0x20] sm:$0xf]
        %v1039 = vld [vmem:[%s1029 + $0x24] sm:$0xf]
        %v1040 = vld [vmem:[%s1029 + $0x28] sm:$0xf]
        %v1041 = vld [vmem:[%s1029 + $0x2c] sm:$0xf]
        %v1042 = vld [vmem:[%s1029 + $0x30] sm:$0xf]
        %v1043 = vld [vmem:[%s1029 + $0x34] sm:$0xf]
        %v1044 = vld [vmem:[%s1029 + $0x38] sm:$0xf]
        %v1045 = vld [vmem:[%s1029 + $0x3c] sm:$0xf]
        %v1047 = vunpack.c.l.b16 %v1028
        %v1048 = vpack.c.b16 %v947, %v1047
        %v1049 = vrot.slane %v1048, 1
        %v1050 = vrot.slane %v950, 1
        %v1051 = vsel %vm474, %v1049, %v1050
        %v1069 = vunpack.c.l.b16 %v1030
        %v1070 = vunpack.c.l.b16 %v1031
        %v1071 = vunpack.c.l.b16 %v1032
        %v1072 = vunpack.c.l.b16 %v1033
        %v1073 = vunpack.c.l.b16 %v1034
        %v1074 = vunpack.c.l.b16 %v1035
        %v1075 = vunpack.c.l.b16 %v1036
        %v1076 = vunpack.c.l.b16 %v1037
        %v1077 = vunpack.c.l.b16 %v1038
        %v1078 = vunpack.c.l.b16 %v1039
        %v1079 = vunpack.c.l.b16 %v1040
        %v1080 = vunpack.c.l.b16 %v1041
        %v1081 = vunpack.c.l.b16 %v1042
        %v1082 = vunpack.c.l.b16 %v1043
        %v1083 = vunpack.c.l.b16 %v1044
        %v1084 = vunpack.c.l.b16 %v1045
        %v1085 = vpack.c.b16 %v1070, %v1069
        %v1086 = vpack.c.b16 %v1072, %v1071
        %v1087 = vpack.c.b16 %v1074, %v1073
        %v1088 = vpack.c.b16 %v1076, %v1075
        %v1089 = vpack.c.b16 %v1078, %v1077
        %v1090 = vpack.c.b16 %v1080, %v1079
        %v1091 = vpack.c.b16 %v1082, %v1081
        %v1092 = vpack.c.b16 %v1084, %v1083
        %1101 = vmatpush.bf16.msra.mxu0 %v1092
        %1102 = vmatpush.bf16.msra.mxu0 %v1091
        %1103 = vmatpush.bf16.msra.mxu0 %v1090
        %1104 = vmatpush.bf16.msra.mxu0 %v1089
        %1105 = vmatpush.bf16.msra.mxu0 %v1088
        %1106 = vmatpush.bf16.msra.mxu0 %v1087
        %1107 = vmatpush.bf16.msra.mxu0 %v1086
        %1108 = vmatpush.bf16.msra.mxu0 %v1085
        %1109 = vmatmul.bf16.gmra.mxu0 %v1051
        %v1110 = vpop.f32.mrf.mxu0
        %v1111 = vadd.f32 0.0, %v1110
        %v1112 = vpop.f32.mrf.mxu0
        %v1113 = vadd.f32 0.0, %v1112
        %1114 = vdwg.mxu0
        %v1115 = vadd.f32 %v1026, %v1111
        %v1116 = vadd.f32 %v1027, %v1113
        %v1117 = vpack.c.bf16 %v1115, %v1115
        %v1118 = vpack.c.bf16 %v1116, %v1116
        %s1119 = smul.u32 %s259, 2
        %s1120 = smul.addr %s1119, 4
        %s1121 = scalar_lea.vmem %s240, %s1120
        %vm1122 = vcmask 60416
        %1123 = vst.msk [vmem:[%s1121] sm:$0xf] %vm1122, %v1117
        %1124 = vst.msk [vmem:[%s1121 + $0x4] sm:$0xf] %vm1122, %v1118
        %vm1125 = vcmask 64512
        %v1126 = vsel %vm1125, %v1115, 0.0
        %v1127 = vsel %vm1125, %v1116, 0.0
        %v1128 = vadd.f32 %v1126, %v1127
        %v1129 = vrot.slane %v1128, 4
        %v1130 = vadd.f32 %v1128, %v1129
        %v1131 = vrot.slane %v1130, 2
        %v1132 = vadd.f32 %v1130, %v1131
        %v1133 = vrot.slane %v1132, 1
        %v1134 = vadd.f32 %v1132, %v1133
        %v1135 = vadd.f32 %v264, %v1134
        %v1136 = vmul.f32 %v1115, %v1115
        %v1137 = vmul.f32 %v1116, %v1116
        %v1138 = vsel %vm1125, %v1136, 0.0
        %v1139 = vsel %vm1125, %v1137, 0.0
        %v1140 = vadd.f32 %v1138, %v1139
        %v1141 = vrot.slane %v1140, 4
        %v1142 = vadd.f32 %v1140, %v1141
        %v1143 = vrot.slane %v1142, 2
        %v1144 = vadd.f32 %v1142, %v1143
        %v1145 = vrot.slane %v1144, 1
        %v1146 = vadd.f32 %v1144, %v1145
        %v1147 = vadd.f32 %v265, %v1146
      $region33: #{tpu_custom_call.1} parent=27 // loop_footer
        %s261 = sadd.s32 %s259, 1
      $region34: #{tpu_custom_call.1} parent=27 // loop_footer_branch
        %258 = sbr.rel target = $region30
      $region35: #{tpu_custom_call.1} parent=27 // loop_exit
        _
      %vm1148 = vcmask 64512
      %1149 = vst.msk [vmem:[%s246] sm:$0xff] %vm1148, %v264
      %1150 = vst.msk [vmem:[%s252] sm:$0xff] %vm1148, %v265
      %s1151 = smul.u32 16, %s21
      %p1152 = scmp.lt.s32.totalorder %s20, 1
      %s1153 = scalar_select %p1152, %s20, 1
      %p1154 = scmp.lt.s32.totalorder %s1151, 15
      %s1155 = scalar_select %p1154, %s1151, 15
      %s1156 = smul.addr %s1155, 2
      %s1157 = smul.addr %s1153, 32
      %s1158 = sadd.s32 %s1156, %s1157
      %s1159 = smul.addr %s1158, 4
      %s1160 = scalar_lea.vmem %s2, %s1159
      %s1161 = sadd.s32 %s20, %s21
      %p1162 = scmp.lt.s32.totalorder %s1161, 1
      %s1163 = scalar_select %p1162, %s1161, 1
      %s1164 = smul.addr %s1163, 8
      %s1165 = scalar_lea.vmem %s3, %s1164
      %s1166 = sadd.s32 %s20, %s21
      %p1167 = scmp.lt.s32.totalorder %s1166, 1
      %s1168 = scalar_select %p1167, %s1166, 1
      %s1169 = smul.addr %s1168, 8
      %s1170 = scalar_lea.vmem %s4, %s1169
      // Predicated region
      $region36: #{tpu_custom_call.1} parent=27 // pred_check
        %p1171 = pneg %p95
      $region37: #{tpu_custom_call.1} parent=27 // pred_check_branch
        %1173 = sbr.rel (%p1171) target = $region39
      $region38: #{tpu_custom_call.1} parent=27 // pred_region
        %s1174 = smul.u32 16, %s21
      $region39: #{tpu_custom_call.1} parent=27 // pred_fallthru
        _
      // Predicated region
      $region40: #{tpu_custom_call.1} parent=27 // pred_check
        %p1175 = pneg %p123
      $region41: #{tpu_custom_call.1} parent=27 // pred_check_branch
        %1177 = sbr.rel (%p1175) target = $region43
      $region42: #{tpu_custom_call.1} parent=27 // pred_region
        %s1178 = sadd.s32 %s20, %s21
      $region43: #{tpu_custom_call.1} parent=27 // pred_fallthru
        _
      // Predicated region
      $region44: #{tpu_custom_call.1} parent=27 // pred_check
        %p1179 = pneg %p151
      $region45: #{tpu_custom_call.1} parent=27 // pred_check_branch
        %1181 = sbr.rel (%p1179) target = $region47
      $region46: #{tpu_custom_call.1} parent=27 // pred_region
        %s1182 = sadd.s32 %s20, %s21
      $region47: #{tpu_custom_call.1} parent=27 // pred_fallthru
        _
    $region28: #{tpu_custom_call.1} parent=5 // pred_fallthru
      _
    %p1183 = scmp.le.s32.totalorder 2, %s11
    // Predicated region
    $region48: #{tpu_custom_call.1} parent=5 // pred_check
      %p1184 = pneg %p1183
    $region49: #{tpu_custom_call.1} parent=5 // pred_check_branch
      %1186 = sbr.rel (%p1184) target = $region51
    $region50: #{tpu_custom_call.1} parent=5 // pred_region
      %s1187 = ssub.s32 %s11, 2
      // Predicated region
      $region52: #{tpu_custom_call.1} parent=50 // pred_check
        %p1188 = pneg %p101
      $region53: #{tpu_custom_call.1} parent=50 // pred_check_branch
        %1190 = sbr.rel (%p1188) target = $region55
      $region54: #{tpu_custom_call.1} parent=50 // pred_region
        %s1191 = smul.u32 16, %s23
        %p1192 = scmp.lt.s32.totalorder %s22, 1
        %s1193 = scalar_select %p1192, %s22, 1
        %p1194 = scmp.lt.s32.totalorder %s1191, 15
        %s1195 = scalar_select %p1194, %s1191, 15
        %s1196 = smul.addr %s1195, 2
        %s1197 = smul.addr %s1193, 32
        %s1198 = sadd.s32 %s1196, %s1197
        %s1199 = smul.addr %s1198, 4
        %s1200 = scalar_lea.vmem %s2, %s1199
      $region55: #{tpu_custom_call.1} parent=50 // pred_fallthru
        _
      // Predicated region
      $region56: #{tpu_custom_call.1} parent=50 // pred_check
        %p1201 = pneg %p129
      $region57: #{tpu_custom_call.1} parent=50 // pred_check_branch
        %1203 = sbr.rel (%p1201) target = $region59
      $region58: #{tpu_custom_call.1} parent=50 // pred_region
        %s1204 = sadd.s32 %s22, %s23
        %p1205 = scmp.lt.s32.totalorder %s1204, 1
        %s1206 = scalar_select %p1205, %s1204, 1
        %s1207 = smul.addr %s1206, 8
        %s1208 = scalar_lea.vmem %s3, %s1207
      $region59: #{tpu_custom_call.1} parent=50 // pred_fallthru
        _
      // Predicated region
      $region60: #{tpu_custom_call.1} parent=50 // pred_check
        %p1209 = pneg %p157
      $region61: #{tpu_custom_call.1} parent=50 // pred_check_branch
        %1211 = sbr.rel (%p1209) target = $region63
      $region62: #{tpu_custom_call.1} parent=50 // pred_region
        %s1212 = sadd.s32 %s22, %s23
        %p1213 = scmp.lt.s32.totalorder %s1212, 1
        %s1214 = scalar_select %p1213, %s1212, 1
        %s1215 = smul.addr %s1214, 8
        %s1216 = scalar_lea.vmem %s4, %s1215
      $region63: #{tpu_custom_call.1} parent=50 // pred_fallthru
        _
    $region51: #{tpu_custom_call.1} parent=5 // pred_fallthru
      _
  $region6: #{tpu_custom_call.1} parent=0 // loop_footer
    %s15 = sadd.s32 1, %s11
  $region7: #{tpu_custom_call.1} parent=0 // loop_footer_branch
    %10 = sbr.rel target = $region3
  $region8: #{tpu_custom_call.1} parent=0 // loop_exit
    _

</llo_original>
